<compile_context>
chip_gen: v7x
topology: tpu7x:2x2x1
jax: 0.10.0
libtpu: 0.0.40
codegen_flags: <defaults>
</compile_context>

<pallas_src>
import functools

import jax
import jax.numpy as jnp
import numpy as np
from jax import lax
from jax.experimental import pallas as pl
from jax.experimental.pallas import tpu as pltpu


# ---------------------------------------------------------------------------
# Fused kernel: LSTM over time (h, c register-resident), MLP head on
# zero-padded slabs, softmax over the size1 groups. Gate order = PyTorch
# nn.LSTM: [i, f, g, o].
# ---------------------------------------------------------------------------
def fused_lstm_head_kernel(x_ref, lstm_ref, head_ref, out_ref, *,
                           S0, S1, B, T, D, H, K):
    Bp = x_ref.shape[0]
    TD = T * D
    G4 = 4 * H

    # --- LSTM slab slices (static, tile-aligned offsets) ---
    wih_bd = lstm_ref[0:TD, :]                    # (TD, T*4H) block-diag Wih^T
    bias = lstm_ref[TD:TD + 1, :]                 # (1, T*4H) tiled (b_ih + b_hh)
    whh = lstm_ref[TD + 8:TD + 8 + H, 0:G4]       # (H, 4H)   Whh^T

    # Hoisted input projection for every timestep: one lane-dense matmul
    # (8,128)@(128,1024); per-step gate slices land on exact 128-lane bounds.
    gates_x = jnp.dot(x_ref[...], wih_bd,
                      preferred_element_type=jnp.float32) + bias   # (Bp, T*4H)

    h = jnp.zeros((Bp, H), jnp.float32)
    c = jnp.zeros((Bp, H), jnp.float32)

    # Fully unrolled time recurrence (T static & small). Per step only the
    # (Bp,H)@(H,4H) dot and the gate activations sit on the serial path.
    for t in range(T):
        g = gates_x[:, t * G4:(t + 1) * G4] + jnp.dot(
            h, whh, preferred_element_type=jnp.float32)            # (Bp, 4H)
        s = jax.nn.sigmoid(g)              # one EUP pass over the full vreg
        tg = jnp.tanh(g[:, 2 * H:3 * H])   # tanh only on the g-gate slice
        c = s[:, H:2 * H] * c + s[:, 0:H] * tg
        h = s[:, 3 * H:4 * H] * jnp.tanh(c)

    # --- MLP head on zero-padded (K rows W^T | 1 row bias) slabs ---
    # Lanes beyond each layer's true width stay exactly zero (LeakyReLU(0)==0).
    # Layer order: Linear(H,8) LReLU Linear(8,5) LReLU Linear(5,5) LReLU
    #              Linear(5,8) LReLU Linear(8,1)
    a = h                                                          # (Bp, K)
    n_layers = head_ref.shape[0]
    for k in range(n_layers):
        slab_k = head_ref[k]                                       # (K+8, K)
        a = (jnp.dot(a, slab_k[0:K, :], preferred_element_type=jnp.float32)
             + slab_k[K:K + 1, :])
        if k < n_layers - 1:
            a = jnp.where(a >= 0, a, 0.01 * a)                     # LeakyReLU(0.01)
    logits = a[:, 0:1]                                             # (Bp, 1)

    # --- softmax over each size1 group (PyTorch Softmax(dim=1)) ---
    # Mask padded batch rows BEFORE the max so they can never dominate it.
    b_col = lax.broadcasted_iota(jnp.int32, (Bp, 1), 0)
    z = jnp.where(b_col < B, logits, jnp.float32(-1e30))
    zmax = jnp.max(z, axis=0, keepdims=True)
    e = jnp.exp(z - zmax)                          # padded rows -> exactly 0

    # G[s0, b] = 1 iff s0*S1 <= b < (s0+1)*S1   (range compares, no // or %)
    s0_r = lax.broadcasted_iota(jnp.int32, (S0, Bp), 0)
    b_r = lax.broadcasted_iota(jnp.int32, (S0, Bp), 1)
    gsel = ((b_r >= s0_r * S1) & (b_r < (s0_r + 1) * S1)).astype(jnp.float32)

    # Sel_aug[b, s1] = 1 iff b == s0*S1 + s1 for some s0 (i.e. b % S1 == s1);
    # last column is all ones so one dot yields [num | den].
    b_c = lax.broadcasted_iota(jnp.int32, (Bp, S1 + 1), 0)
    s1_c = lax.broadcasted_iota(jnp.int32, (Bp, S1 + 1), 1)
    hit = s1_c == S1
    for s0 in range(S0):
        hit = hit | ((b_c - s1_c) == (s0 * S1))
    sel_aug = hit.astype(jnp.float32)

    res = jnp.dot(gsel, e * sel_aug,
                  preferred_element_type=jnp.float32)              # (S0, S1+1)
    out_ref[...] = (res[:, 0:S1] / res[:, S1:S1 + 1]).astype(out_ref.dtype)


# ---------------------------------------------------------------------------
# One-time parameter packing (pure numpy; do this at param-load time).
# ---------------------------------------------------------------------------
def pack_simple_lstm_params(params, T):
    w_ih = np.asarray(params["w_ih"], np.float32)      # (4H, D)
    w_hh = np.asarray(params["w_hh"], np.float32)      # (4H, H)
    b_ih = np.asarray(params["b_ih"], np.float32)
    b_hh = np.asarray(params["b_hh"], np.float32)
    G4, D = w_ih.shape
    H = w_hh.shape[1]
    TD = T * D

    # LSTM slab: rows [0,TD) block-diag Wih^T, row TD tiled bias, rows
    # [TD+8, TD+8+H) Whh^T in lanes [0,4H).
    lstm_slab = np.zeros((TD + 8 + H, T * G4), np.float32)
    wih_t = w_ih.T                                      # (D, 4H)
    for t in range(T):
        lstm_slab[t * D:(t + 1) * D, t * G4:(t + 1) * G4] = wih_t
    lstm_slab[TD, :] = np.tile(b_ih + b_hh, T)
    lstm_slab[TD + 8:TD + 8 + H, :G4] = w_hh.T

    # Head slab: 5 layers, each (K rows W^T | bias row), zero-padded to (K+8, K).
    K = H
    names = [("w_in", "b_in"), ("w_n1", "b_n1"), ("w_n2", "b_n2"),
             ("w_n3", "b_n3"), ("w_out", "b_out")]
    head_slab = np.zeros((len(names), K + 8, K), np.float32)
    for k, (wn, bn) in enumerate(names):
        W = np.asarray(params[wn], np.float32)          # (out, in)
        od, idim = W.shape
        assert idim <= K and od <= K, "head layer wider than slab"
        head_slab[k, :idim, :od] = W.T
        head_slab[k, K, :od] = np.asarray(params[bn], np.float32)

    return jnp.asarray(lstm_slab), jnp.asarray(head_slab)


# ---------------------------------------------------------------------------
# Per-call wrapper: layout-only glue (view reshape + row pad), one pallas_call.
# ---------------------------------------------------------------------------
def simple_lstm_forward(x, lstm_slab, head_slab):
    S0, S1, T, D = x.shape
    B = S0 * S1
    Bp = ((B + 7) // 8) * 8                 # pad batch to the 8-sublane quantum
    TD = T * D
    H = lstm_slab.shape[0] - TD - 8
    K = head_slab.shape[2]

    # Lane-dense x tile: (Bp, T*D). Row-major flatten is a view; pad rows only.
    x_dense = jnp.pad(x.reshape(B, TD), ((0, Bp - B), (0, 0)))

    kernel = functools.partial(fused_lstm_head_kernel,
                               S0=S0, S1=S1, B=B, T=T, D=D, H=H, K=K)
    vmem = pl.BlockSpec(memory_space=pltpu.MemorySpace.VMEM)
    return pl.pallas_call(
        kernel,
        out_shape=jax.ShapeDtypeStruct((S0, S1), jnp.float32),
        in_specs=[vmem, vmem, vmem],
        out_specs=vmem,
    )(x_dense, lstm_slab, head_slab)


# ---------------------------------------------------------------------------
# Pure-JAX reference (mirrors the PyTorch forward exactly)
# ---------------------------------------------------------------------------
def reference_forward(x, params):
    S0, S1, T, D = x.shape
    B = S0 * S1
    H = params["w_hh"].shape[1]
    xb = x.reshape(B, T, D)
    h = jnp.zeros((B, H), jnp.float32)
    c = jnp.zeros((B, H), jnp.float32)
    for t in range(T):
        g = (xb[:, t, :] @ params["w_ih"].T + params["b_ih"]
             + h @ params["w_hh"].T + params["b_hh"])
        i = jax.nn.sigmoid(g[:, :H])
        f = jax.nn.sigmoid(g[:, H:2 * H])
        gg = jnp.tanh(g[:, 2 * H:3 * H])
        o = jax.nn.sigmoid(g[:, 3 * H:])
        c = f * c + i * gg
        h = o * jnp.tanh(c)

    def leaky(v):
        return jnp.where(v >= 0, v, 0.01 * v)

    oo = leaky(h @ params["w_in"].T + params["b_in"])
    z = leaky(oo @ params["w_n1"].T + params["b_n1"])
    z = leaky(z @ params["w_n2"].T + params["b_n2"])
    z = z @ params["w_n3"].T + params["b_n3"]
    z = leaky(z)
    logits = (z @ params["w_out"].T + params["b_out"]).reshape(S0, S1, 1)
    return jax.nn.softmax(logits, axis=1)[..., 0]


if __name__ == "__main__":
    # Shapes implied by forward: x = (size0, size1, seq_len, input_size)
    S0, S1, T, D, H = 2, 3, 8, 16, 32

    key = jax.random.PRNGKey(0)
    keys = jax.random.split(key, 16)

    def u(k, shape, fan_in):
        b = 1.0 / np.sqrt(fan_in)
        return jax.random.uniform(k, shape, jnp.float32, -b, b)

    params = dict(
        # nn.LSTM(input_size=D, hidden_size=H, num_layers=1)
        w_ih=u(keys[0], (4 * H, D), H), w_hh=u(keys[1], (4 * H, H), H),
        b_ih=u(keys[2], (4 * H,), H),   b_hh=u(keys[3], (4 * H,), H),
        # linear_in: Linear(H, 8)
        w_in=u(keys[4], (8, H), H),     b_in=u(keys[5], (8,), H),
        # net: Linear(8,5), Linear(5,5), Linear(5,8)
        w_n1=u(keys[6], (5, 8), 8),     b_n1=u(keys[7], (5,), 8),
        w_n2=u(keys[8], (5, 5), 5),     b_n2=u(keys[9], (5,), 5),
        w_n3=u(keys[10], (8, 5), 5),    b_n3=u(keys[11], (8,), 5),
        # linear_out: Linear(8, 1)
        w_out=u(keys[12], (1, 8), 8),   b_out=u(keys[13], (1,), 8),
    )

    x = jax.random.normal(keys[14], (S0, S1, T, D), jnp.float32)

    # One-time weight packing (not on the per-call path).
    lstm_slab, head_slab = pack_simple_lstm_params(params, T)

    fwd = jax.jit(simple_lstm_forward)
    pred = fwd(x, lstm_slab, head_slab)
    jax.block_until_ready(pred)

    ref = reference_forward(x, params)
    np.testing.assert_allclose(np.asarray(pred), np.asarray(ref),
                               rtol=2e-4, atol=1e-4)
    assert pred.shape == (S0, S1)
    print("KERNEL_OK")
</pallas_src>

<mosaic_0001>
module attributes {stable_mosaic.version = 11 : i64} {
  func.func @fused_lstm_head_kernel(%arg0: memref<8x128xf32, #tpu.memory_space<vmem>>, %arg1: memref<168x1024xf32, #tpu.memory_space<vmem>>, %arg2: memref<5x40x32xf32, #tpu.memory_space<vmem>>, %arg3: memref<2x3xf32, #tpu.memory_space<vmem>>) attributes {dimension_semantics = [], scalar_prefetch = 0 : i64, scratch_operands = 0 : i64, tpu.core_type = #tpu.core_type<tc>} {
    %c0 = arith.constant 0 : index
    %c0_0 = arith.constant 0 : index
    %0 = vector.load %arg1[%c0, %c0_0] : memref<168x1024xf32, #tpu.memory_space<vmem>>, vector<128x1024xf32>
    %c128 = arith.constant 128 : index
    %c0_1 = arith.constant 0 : index
    %1 = vector.load %arg1[%c128, %c0_1] : memref<168x1024xf32, #tpu.memory_space<vmem>>, vector<1x1024xf32>
    %c136 = arith.constant 136 : index
    %c0_2 = arith.constant 0 : index
    %2 = vector.load %arg1[%c136, %c0_2] : memref<168x1024xf32, #tpu.memory_space<vmem>>, vector<32x128xf32>
    %c0_3 = arith.constant 0 : index
    %c0_4 = arith.constant 0 : index
    %3 = vector.load %arg0[%c0_3, %c0_4] : memref<8x128xf32, #tpu.memory_space<vmem>>, vector<8x128xf32>
    %cst = arith.constant dense<0.000000e+00> : vector<8x1024xf32>
    %4 = tpu.matmul %3, %0, %cst {dimension_numbers = #tpu.dot_dimension_numbers<[1], [0], [0], [1], [0, 0, 1, 1], [], []>} : vector<8x128xf32>, vector<128x1024xf32>, vector<8x1024xf32> -> vector<8x1024xf32>
    %5 = vector.broadcast %1 : vector<1x1024xf32> to vector<8x1024xf32>
    %6 = arith.addf %4, %5 : vector<8x1024xf32>
    %cst_5 = arith.constant 0.000000e+00 : f32
    %7 = vector.broadcast %cst_5 : f32 to vector<8x32xf32>
    %cst_6 = arith.constant 0.000000e+00 : f32
    %8 = vector.broadcast %cst_6 : f32 to vector<8x32xf32>
    %9 = vector.extract_strided_slice %6 {offsets = [0, 0], sizes = [8, 128], strides = [1, 1]} : vector<8x1024xf32> to vector<8x128xf32>
    %cst_7 = arith.constant dense<0.000000e+00> : vector<8x128xf32>
    %10 = tpu.matmul %7, %2, %cst_7 {dimension_numbers = #tpu.dot_dimension_numbers<[1], [0], [0], [1], [0, 0, 1, 1], [], []>} : vector<8x32xf32>, vector<32x128xf32>, vector<8x128xf32> -> vector<8x128xf32>
    %11 = arith.addf %9, %10 : vector<8x128xf32>
    %12 = arith.negf %11 : vector<8x128xf32>
    %13 = math.exp %12 : vector<8x128xf32>
    %cst_8 = arith.constant 1.000000e+00 : f32
    %14 = vector.broadcast %cst_8 : f32 to vector<8x128xf32>
    %15 = arith.addf %14, %13 : vector<8x128xf32>
    %16 = arith.divf %14, %15 : vector<8x128xf32>
    %17 = vector.extract_strided_slice %11 {offsets = [0, 64], sizes = [8, 32], strides = [1, 1]} : vector<8x128xf32> to vector<8x32xf32>
    %18 = math.tanh %17 : vector<8x32xf32>
    %19 = vector.extract_strided_slice %16 {offsets = [0, 32], sizes = [8, 32], strides = [1, 1]} : vector<8x128xf32> to vector<8x32xf32>
    %20 = arith.mulf %19, %8 : vector<8x32xf32>
    %21 = vector.extract_strided_slice %16 {offsets = [0, 0], sizes = [8, 32], strides = [1, 1]} : vector<8x128xf32> to vector<8x32xf32>
    %22 = arith.mulf %21, %18 : vector<8x32xf32>
    %23 = arith.addf %20, %22 : vector<8x32xf32>
    %24 = vector.extract_strided_slice %16 {offsets = [0, 96], sizes = [8, 32], strides = [1, 1]} : vector<8x128xf32> to vector<8x32xf32>
    %25 = math.tanh %23 : vector<8x32xf32>
    %26 = arith.mulf %24, %25 : vector<8x32xf32>
    %27 = vector.extract_strided_slice %6 {offsets = [0, 128], sizes = [8, 128], strides = [1, 1]} : vector<8x1024xf32> to vector<8x128xf32>
    %cst_9 = arith.constant dense<0.000000e+00> : vector<8x128xf32>
    %28 = tpu.matmul %26, %2, %cst_9 {dimension_numbers = #tpu.dot_dimension_numbers<[1], [0], [0], [1], [0, 0, 1, 1], [], []>} : vector<8x32xf32>, vector<32x128xf32>, vector<8x128xf32> -> vector<8x128xf32>
    %29 = arith.addf %27, %28 : vector<8x128xf32>
    %30 = arith.negf %29 : vector<8x128xf32>
    %31 = math.exp %30 : vector<8x128xf32>
    %cst_10 = arith.constant 1.000000e+00 : f32
    %32 = vector.broadcast %cst_10 : f32 to vector<8x128xf32>
    %33 = arith.addf %32, %31 : vector<8x128xf32>
    %34 = arith.divf %32, %33 : vector<8x128xf32>
    %35 = vector.extract_strided_slice %29 {offsets = [0, 64], sizes = [8, 32], strides = [1, 1]} : vector<8x128xf32> to vector<8x32xf32>
    %36 = math.tanh %35 : vector<8x32xf32>
    %37 = vector.extract_strided_slice %34 {offsets = [0, 32], sizes = [8, 32], strides = [1, 1]} : vector<8x128xf32> to vector<8x32xf32>
    %38 = arith.mulf %37, %23 : vector<8x32xf32>
    %39 = vector.extract_strided_slice %34 {offsets = [0, 0], sizes = [8, 32], strides = [1, 1]} : vector<8x128xf32> to vector<8x32xf32>
    %40 = arith.mulf %39, %36 : vector<8x32xf32>
    %41 = arith.addf %38, %40 : vector<8x32xf32>
    %42 = vector.extract_strided_slice %34 {offsets = [0, 96], sizes = [8, 32], strides = [1, 1]} : vector<8x128xf32> to vector<8x32xf32>
    %43 = math.tanh %41 : vector<8x32xf32>
    %44 = arith.mulf %42, %43 : vector<8x32xf32>
    %45 = vector.extract_strided_slice %6 {offsets = [0, 256], sizes = [8, 128], strides = [1, 1]} : vector<8x1024xf32> to vector<8x128xf32>
    %cst_11 = arith.constant dense<0.000000e+00> : vector<8x128xf32>
    %46 = tpu.matmul %44, %2, %cst_11 {dimension_numbers = #tpu.dot_dimension_numbers<[1], [0], [0], [1], [0, 0, 1, 1], [], []>} : vector<8x32xf32>, vector<32x128xf32>, vector<8x128xf32> -> vector<8x128xf32>
    %47 = arith.addf %45, %46 : vector<8x128xf32>
    %48 = arith.negf %47 : vector<8x128xf32>
    %49 = math.exp %48 : vector<8x128xf32>
    %cst_12 = arith.constant 1.000000e+00 : f32
    %50 = vector.broadcast %cst_12 : f32 to vector<8x128xf32>
    %51 = arith.addf %50, %49 : vector<8x128xf32>
    %52 = arith.divf %50, %51 : vector<8x128xf32>
    %53 = vector.extract_strided_slice %47 {offsets = [0, 64], sizes = [8, 32], strides = [1, 1]} : vector<8x128xf32> to vector<8x32xf32>
    %54 = math.tanh %53 : vector<8x32xf32>
    %55 = vector.extract_strided_slice %52 {offsets = [0, 32], sizes = [8, 32], strides = [1, 1]} : vector<8x128xf32> to vector<8x32xf32>
    %56 = arith.mulf %55, %41 : vector<8x32xf32>
    %57 = vector.extract_strided_slice %52 {offsets = [0, 0], sizes = [8, 32], strides = [1, 1]} : vector<8x128xf32> to vector<8x32xf32>
    %58 = arith.mulf %57, %54 : vector<8x32xf32>
    %59 = arith.addf %56, %58 : vector<8x32xf32>
    %60 = vector.extract_strided_slice %52 {offsets = [0, 96], sizes = [8, 32], strides = [1, 1]} : vector<8x128xf32> to vector<8x32xf32>
    %61 = math.tanh %59 : vector<8x32xf32>
    %62 = arith.mulf %60, %61 : vector<8x32xf32>
    %63 = vector.extract_strided_slice %6 {offsets = [0, 384], sizes = [8, 128], strides = [1, 1]} : vector<8x1024xf32> to vector<8x128xf32>
    %cst_13 = arith.constant dense<0.000000e+00> : vector<8x128xf32>
    %64 = tpu.matmul %62, %2, %cst_13 {dimension_numbers = #tpu.dot_dimension_numbers<[1], [0], [0], [1], [0, 0, 1, 1], [], []>} : vector<8x32xf32>, vector<32x128xf32>, vector<8x128xf32> -> vector<8x128xf32>
    %65 = arith.addf %63, %64 : vector<8x128xf32>
    %66 = arith.negf %65 : vector<8x128xf32>
    %67 = math.exp %66 : vector<8x128xf32>
    %cst_14 = arith.constant 1.000000e+00 : f32
    %68 = vector.broadcast %cst_14 : f32 to vector<8x128xf32>
    %69 = arith.addf %68, %67 : vector<8x128xf32>
    %70 = arith.divf %68, %69 : vector<8x128xf32>
    %71 = vector.extract_strided_slice %65 {offsets = [0, 64], sizes = [8, 32], strides = [1, 1]} : vector<8x128xf32> to vector<8x32xf32>
    %72 = math.tanh %71 : vector<8x32xf32>
    %73 = vector.extract_strided_slice %70 {offsets = [0, 32], sizes = [8, 32], strides = [1, 1]} : vector<8x128xf32> to vector<8x32xf32>
    %74 = arith.mulf %73, %59 : vector<8x32xf32>
    %75 = vector.extract_strided_slice %70 {offsets = [0, 0], sizes = [8, 32], strides = [1, 1]} : vector<8x128xf32> to vector<8x32xf32>
    %76 = arith.mulf %75, %72 : vector<8x32xf32>
    %77 = arith.addf %74, %76 : vector<8x32xf32>
    %78 = vector.extract_strided_slice %70 {offsets = [0, 96], sizes = [8, 32], strides = [1, 1]} : vector<8x128xf32> to vector<8x32xf32>
    %79 = math.tanh %77 : vector<8x32xf32>
    %80 = arith.mulf %78, %79 : vector<8x32xf32>
    %81 = vector.extract_strided_slice %6 {offsets = [0, 512], sizes = [8, 128], strides = [1, 1]} : vector<8x1024xf32> to vector<8x128xf32>
    %cst_15 = arith.constant dense<0.000000e+00> : vector<8x128xf32>
    %82 = tpu.matmul %80, %2, %cst_15 {dimension_numbers = #tpu.dot_dimension_numbers<[1], [0], [0], [1], [0, 0, 1, 1], [], []>} : vector<8x32xf32>, vector<32x128xf32>, vector<8x128xf32> -> vector<8x128xf32>
    %83 = arith.addf %81, %82 : vector<8x128xf32>
    %84 = arith.negf %83 : vector<8x128xf32>
    %85 = math.exp %84 : vector<8x128xf32>
    %cst_16 = arith.constant 1.000000e+00 : f32
    %86 = vector.broadcast %cst_16 : f32 to vector<8x128xf32>
    %87 = arith.addf %86, %85 : vector<8x128xf32>
    %88 = arith.divf %86, %87 : vector<8x128xf32>
    %89 = vector.extract_strided_slice %83 {offsets = [0, 64], sizes = [8, 32], strides = [1, 1]} : vector<8x128xf32> to vector<8x32xf32>
    %90 = math.tanh %89 : vector<8x32xf32>
    %91 = vector.extract_strided_slice %88 {offsets = [0, 32], sizes = [8, 32], strides = [1, 1]} : vector<8x128xf32> to vector<8x32xf32>
    %92 = arith.mulf %91, %77 : vector<8x32xf32>
    %93 = vector.extract_strided_slice %88 {offsets = [0, 0], sizes = [8, 32], strides = [1, 1]} : vector<8x128xf32> to vector<8x32xf32>
    %94 = arith.mulf %93, %90 : vector<8x32xf32>
    %95 = arith.addf %92, %94 : vector<8x32xf32>
    %96 = vector.extract_strided_slice %88 {offsets = [0, 96], sizes = [8, 32], strides = [1, 1]} : vector<8x128xf32> to vector<8x32xf32>
    %97 = math.tanh %95 : vector<8x32xf32>
    %98 = arith.mulf %96, %97 : vector<8x32xf32>
    %99 = vector.extract_strided_slice %6 {offsets = [0, 640], sizes = [8, 128], strides = [1, 1]} : vector<8x1024xf32> to vector<8x128xf32>
    %cst_17 = arith.constant dense<0.000000e+00> : vector<8x128xf32>
    %100 = tpu.matmul %98, %2, %cst_17 {dimension_numbers = #tpu.dot_dimension_numbers<[1], [0], [0], [1], [0, 0, 1, 1], [], []>} : vector<8x32xf32>, vector<32x128xf32>, vector<8x128xf32> -> vector<8x128xf32>
    %101 = arith.addf %99, %100 : vector<8x128xf32>
    %102 = arith.negf %101 : vector<8x128xf32>
    %103 = math.exp %102 : vector<8x128xf32>
    %cst_18 = arith.constant 1.000000e+00 : f32
    %104 = vector.broadcast %cst_18 : f32 to vector<8x128xf32>
    %105 = arith.addf %104, %103 : vector<8x128xf32>
    %106 = arith.divf %104, %105 : vector<8x128xf32>
    %107 = vector.extract_strided_slice %101 {offsets = [0, 64], sizes = [8, 32], strides = [1, 1]} : vector<8x128xf32> to vector<8x32xf32>
    %108 = math.tanh %107 : vector<8x32xf32>
    %109 = vector.extract_strided_slice %106 {offsets = [0, 32], sizes = [8, 32], strides = [1, 1]} : vector<8x128xf32> to vector<8x32xf32>
    %110 = arith.mulf %109, %95 : vector<8x32xf32>
    %111 = vector.extract_strided_slice %106 {offsets = [0, 0], sizes = [8, 32], strides = [1, 1]} : vector<8x128xf32> to vector<8x32xf32>
    %112 = arith.mulf %111, %108 : vector<8x32xf32>
    %113 = arith.addf %110, %112 : vector<8x32xf32>
    %114 = vector.extract_strided_slice %106 {offsets = [0, 96], sizes = [8, 32], strides = [1, 1]} : vector<8x128xf32> to vector<8x32xf32>
    %115 = math.tanh %113 : vector<8x32xf32>
    %116 = arith.mulf %114, %115 : vector<8x32xf32>
    %117 = vector.extract_strided_slice %6 {offsets = [0, 768], sizes = [8, 128], strides = [1, 1]} : vector<8x1024xf32> to vector<8x128xf32>
    %cst_19 = arith.constant dense<0.000000e+00> : vector<8x128xf32>
    %118 = tpu.matmul %116, %2, %cst_19 {dimension_numbers = #tpu.dot_dimension_numbers<[1], [0], [0], [1], [0, 0, 1, 1], [], []>} : vector<8x32xf32>, vector<32x128xf32>, vector<8x128xf32> -> vector<8x128xf32>
    %119 = arith.addf %117, %118 : vector<8x128xf32>
    %120 = arith.negf %119 : vector<8x128xf32>
    %121 = math.exp %120 : vector<8x128xf32>
    %cst_20 = arith.constant 1.000000e+00 : f32
    %122 = vector.broadcast %cst_20 : f32 to vector<8x128xf32>
    %123 = arith.addf %122, %121 : vector<8x128xf32>
    %124 = arith.divf %122, %123 : vector<8x128xf32>
    %125 = vector.extract_strided_slice %119 {offsets = [0, 64], sizes = [8, 32], strides = [1, 1]} : vector<8x128xf32> to vector<8x32xf32>
    %126 = math.tanh %125 : vector<8x32xf32>
    %127 = vector.extract_strided_slice %124 {offsets = [0, 32], sizes = [8, 32], strides = [1, 1]} : vector<8x128xf32> to vector<8x32xf32>
    %128 = arith.mulf %127, %113 : vector<8x32xf32>
    %129 = vector.extract_strided_slice %124 {offsets = [0, 0], sizes = [8, 32], strides = [1, 1]} : vector<8x128xf32> to vector<8x32xf32>
    %130 = arith.mulf %129, %126 : vector<8x32xf32>
    %131 = arith.addf %128, %130 : vector<8x32xf32>
    %132 = vector.extract_strided_slice %124 {offsets = [0, 96], sizes = [8, 32], strides = [1, 1]} : vector<8x128xf32> to vector<8x32xf32>
    %133 = math.tanh %131 : vector<8x32xf32>
    %134 = arith.mulf %132, %133 : vector<8x32xf32>
    %135 = vector.extract_strided_slice %6 {offsets = [0, 896], sizes = [8, 128], strides = [1, 1]} : vector<8x1024xf32> to vector<8x128xf32>
    %cst_21 = arith.constant dense<0.000000e+00> : vector<8x128xf32>
    %136 = tpu.matmul %134, %2, %cst_21 {dimension_numbers = #tpu.dot_dimension_numbers<[1], [0], [0], [1], [0, 0, 1, 1], [], []>} : vector<8x32xf32>, vector<32x128xf32>, vector<8x128xf32> -> vector<8x128xf32>
    %137 = arith.addf %135, %136 : vector<8x128xf32>
    %138 = arith.negf %137 : vector<8x128xf32>
    %139 = math.exp %138 : vector<8x128xf32>
    %cst_22 = arith.constant 1.000000e+00 : f32
    %140 = vector.broadcast %cst_22 : f32 to vector<8x128xf32>
    %141 = arith.addf %140, %139 : vector<8x128xf32>
    %142 = arith.divf %140, %141 : vector<8x128xf32>
    %143 = vector.extract_strided_slice %137 {offsets = [0, 64], sizes = [8, 32], strides = [1, 1]} : vector<8x128xf32> to vector<8x32xf32>
    %144 = math.tanh %143 : vector<8x32xf32>
    %145 = vector.extract_strided_slice %142 {offsets = [0, 32], sizes = [8, 32], strides = [1, 1]} : vector<8x128xf32> to vector<8x32xf32>
    %146 = arith.mulf %145, %131 : vector<8x32xf32>
    %147 = vector.extract_strided_slice %142 {offsets = [0, 0], sizes = [8, 32], strides = [1, 1]} : vector<8x128xf32> to vector<8x32xf32>
    %148 = arith.mulf %147, %144 : vector<8x32xf32>
    %149 = arith.addf %146, %148 : vector<8x32xf32>
    %150 = vector.extract_strided_slice %142 {offsets = [0, 96], sizes = [8, 32], strides = [1, 1]} : vector<8x128xf32> to vector<8x32xf32>
    %151 = math.tanh %149 : vector<8x32xf32>
    %152 = arith.mulf %150, %151 : vector<8x32xf32>
    %c0_23 = arith.constant 0 : index
    %c0_24 = arith.constant 0 : index
    %c0_25 = arith.constant 0 : index
    %153 = vector.load %arg2[%c0_23, %c0_24, %c0_25] : memref<5x40x32xf32, #tpu.memory_space<vmem>>, vector<1x40x32xf32>
    %154 = vector.shape_cast %153 : vector<1x40x32xf32> to vector<40x32xf32>
    %155 = vector.extract_strided_slice %154 {offsets = [0, 0], sizes = [32, 32], strides = [1, 1]} : vector<40x32xf32> to vector<32x32xf32>
    %cst_26 = arith.constant dense<0.000000e+00> : vector<8x32xf32>
    %156 = tpu.matmul %152, %155, %cst_26 {dimension_numbers = #tpu.dot_dimension_numbers<[1], [0], [0], [1], [0, 0, 1, 1], [], []>} : vector<8x32xf32>, vector<32x32xf32>, vector<8x32xf32> -> vector<8x32xf32>
    %157 = vector.extract_strided_slice %154 {offsets = [32, 0], sizes = [1, 32], strides = [1, 1]} : vector<40x32xf32> to vector<1x32xf32>
    %158 = vector.broadcast %157 : vector<1x32xf32> to vector<8x32xf32>
    %159 = arith.addf %156, %158 : vector<8x32xf32>
    %cst_27 = arith.constant 0.000000e+00 : f32
    %160 = vector.broadcast %cst_27 : f32 to vector<8x32xf32>
    %161 = arith.cmpf oge, %159, %160 : vector<8x32xf32>
    %cst_28 = arith.constant 0.00999999977 : f32
    %162 = vector.broadcast %cst_28 : f32 to vector<8x32xf32>
    %163 = arith.mulf %162, %159 : vector<8x32xf32>
    %164 = arith.select %161, %159, %163 : vector<8x32xi1>, vector<8x32xf32>
    %c1 = arith.constant 1 : index
    %c0_29 = arith.constant 0 : index
    %c0_30 = arith.constant 0 : index
    %165 = vector.load %arg2[%c1, %c0_29, %c0_30] : memref<5x40x32xf32, #tpu.memory_space<vmem>>, vector<1x40x32xf32>
    %166 = vector.shape_cast %165 : vector<1x40x32xf32> to vector<40x32xf32>
    %167 = vector.extract_strided_slice %166 {offsets = [0, 0], sizes = [32, 32], strides = [1, 1]} : vector<40x32xf32> to vector<32x32xf32>
    %cst_31 = arith.constant dense<0.000000e+00> : vector<8x32xf32>
    %168 = tpu.matmul %164, %167, %cst_31 {dimension_numbers = #tpu.dot_dimension_numbers<[1], [0], [0], [1], [0, 0, 1, 1], [], []>} : vector<8x32xf32>, vector<32x32xf32>, vector<8x32xf32> -> vector<8x32xf32>
    %169 = vector.extract_strided_slice %166 {offsets = [32, 0], sizes = [1, 32], strides = [1, 1]} : vector<40x32xf32> to vector<1x32xf32>
    %170 = vector.broadcast %169 : vector<1x32xf32> to vector<8x32xf32>
    %171 = arith.addf %168, %170 : vector<8x32xf32>
    %cst_32 = arith.constant 0.000000e+00 : f32
    %172 = vector.broadcast %cst_32 : f32 to vector<8x32xf32>
    %173 = arith.cmpf oge, %171, %172 : vector<8x32xf32>
    %cst_33 = arith.constant 0.00999999977 : f32
    %174 = vector.broadcast %cst_33 : f32 to vector<8x32xf32>
    %175 = arith.mulf %174, %171 : vector<8x32xf32>
    %176 = arith.select %173, %171, %175 : vector<8x32xi1>, vector<8x32xf32>
    %c2 = arith.constant 2 : index
    %c0_34 = arith.constant 0 : index
    %c0_35 = arith.constant 0 : index
    %177 = vector.load %arg2[%c2, %c0_34, %c0_35] : memref<5x40x32xf32, #tpu.memory_space<vmem>>, vector<1x40x32xf32>
    %178 = vector.shape_cast %177 : vector<1x40x32xf32> to vector<40x32xf32>
    %179 = vector.extract_strided_slice %178 {offsets = [0, 0], sizes = [32, 32], strides = [1, 1]} : vector<40x32xf32> to vector<32x32xf32>
    %cst_36 = arith.constant dense<0.000000e+00> : vector<8x32xf32>
    %180 = tpu.matmul %176, %179, %cst_36 {dimension_numbers = #tpu.dot_dimension_numbers<[1], [0], [0], [1], [0, 0, 1, 1], [], []>} : vector<8x32xf32>, vector<32x32xf32>, vector<8x32xf32> -> vector<8x32xf32>
    %181 = vector.extract_strided_slice %178 {offsets = [32, 0], sizes = [1, 32], strides = [1, 1]} : vector<40x32xf32> to vector<1x32xf32>
    %182 = vector.broadcast %181 : vector<1x32xf32> to vector<8x32xf32>
    %183 = arith.addf %180, %182 : vector<8x32xf32>
    %cst_37 = arith.constant 0.000000e+00 : f32
    %184 = vector.broadcast %cst_37 : f32 to vector<8x32xf32>
    %185 = arith.cmpf oge, %183, %184 : vector<8x32xf32>
    %cst_38 = arith.constant 0.00999999977 : f32
    %186 = vector.broadcast %cst_38 : f32 to vector<8x32xf32>
    %187 = arith.mulf %186, %183 : vector<8x32xf32>
    %188 = arith.select %185, %183, %187 : vector<8x32xi1>, vector<8x32xf32>
    %c3 = arith.constant 3 : index
    %c0_39 = arith.constant 0 : index
    %c0_40 = arith.constant 0 : index
    %189 = vector.load %arg2[%c3, %c0_39, %c0_40] : memref<5x40x32xf32, #tpu.memory_space<vmem>>, vector<1x40x32xf32>
    %190 = vector.shape_cast %189 : vector<1x40x32xf32> to vector<40x32xf32>
    %191 = vector.extract_strided_slice %190 {offsets = [0, 0], sizes = [32, 32], strides = [1, 1]} : vector<40x32xf32> to vector<32x32xf32>
    %cst_41 = arith.constant dense<0.000000e+00> : vector<8x32xf32>
    %192 = tpu.matmul %188, %191, %cst_41 {dimension_numbers = #tpu.dot_dimension_numbers<[1], [0], [0], [1], [0, 0, 1, 1], [], []>} : vector<8x32xf32>, vector<32x32xf32>, vector<8x32xf32> -> vector<8x32xf32>
    %193 = vector.extract_strided_slice %190 {offsets = [32, 0], sizes = [1, 32], strides = [1, 1]} : vector<40x32xf32> to vector<1x32xf32>
    %194 = vector.broadcast %193 : vector<1x32xf32> to vector<8x32xf32>
    %195 = arith.addf %192, %194 : vector<8x32xf32>
    %cst_42 = arith.constant 0.000000e+00 : f32
    %196 = vector.broadcast %cst_42 : f32 to vector<8x32xf32>
    %197 = arith.cmpf oge, %195, %196 : vector<8x32xf32>
    %cst_43 = arith.constant 0.00999999977 : f32
    %198 = vector.broadcast %cst_43 : f32 to vector<8x32xf32>
    %199 = arith.mulf %198, %195 : vector<8x32xf32>
    %200 = arith.select %197, %195, %199 : vector<8x32xi1>, vector<8x32xf32>
    %c4 = arith.constant 4 : index
    %c0_44 = arith.constant 0 : index
    %c0_45 = arith.constant 0 : index
    %201 = vector.load %arg2[%c4, %c0_44, %c0_45] : memref<5x40x32xf32, #tpu.memory_space<vmem>>, vector<1x40x32xf32>
    %202 = vector.shape_cast %201 : vector<1x40x32xf32> to vector<40x32xf32>
    %203 = vector.extract_strided_slice %202 {offsets = [0, 0], sizes = [32, 32], strides = [1, 1]} : vector<40x32xf32> to vector<32x32xf32>
    %cst_46 = arith.constant dense<0.000000e+00> : vector<8x32xf32>
    %204 = tpu.matmul %200, %203, %cst_46 {dimension_numbers = #tpu.dot_dimension_numbers<[1], [0], [0], [1], [0, 0, 1, 1], [], []>} : vector<8x32xf32>, vector<32x32xf32>, vector<8x32xf32> -> vector<8x32xf32>
    %205 = vector.extract_strided_slice %202 {offsets = [32, 0], sizes = [1, 32], strides = [1, 1]} : vector<40x32xf32> to vector<1x32xf32>
    %206 = vector.broadcast %205 : vector<1x32xf32> to vector<8x32xf32>
    %207 = arith.addf %204, %206 : vector<8x32xf32>
    %208 = vector.extract_strided_slice %207 {offsets = [0, 0], sizes = [8, 1], strides = [1, 1]} : vector<8x32xf32> to vector<8x1xf32>
    %209 = tpu.iota {dimensions = array<i32: 0>} : vector<8x1xi32>
    %c6_i32 = arith.constant 6 : i32
    %210 = vector.broadcast %c6_i32 : i32 to vector<8x1xi32>
    %211 = arith.cmpi slt, %209, %210 : vector<8x1xi32>
    %cst_47 = arith.constant -1.000000e+30 : f32
    %212 = vector.broadcast %cst_47 : f32 to vector<8x1xf32>
    %213 = arith.select %211, %208, %212 : vector<8x1xi1>, vector<8x1xf32>
    %cst_48 = arith.constant dense<0xFF800000> : vector<1xf32>
    %214 = vector.multi_reduction <maximumf>, %213, %cst_48 [0] : vector<8x1xf32> to vector<1xf32>
    %215 = vector.shape_cast %214 : vector<1xf32> to vector<1x1xf32>
    %216 = vector.broadcast %215 : vector<1x1xf32> to vector<8x1xf32>
    %217 = arith.subf %213, %216 : vector<8x1xf32>
    %218 = math.exp %217 : vector<8x1xf32>
    %219 = tpu.iota {dimensions = array<i32: 0>} : vector<2x8xi32>
    %220 = tpu.iota {dimensions = array<i32: 1>} : vector<2x8xi32>
    %c3_i32 = arith.constant 3 : i32
    %221 = vector.broadcast %c3_i32 : i32 to vector<2x8xi32>
    %222 = arith.muli %219, %221 : vector<2x8xi32>
    %223 = arith.cmpi sge, %220, %222 : vector<2x8xi32>
    %c1_i32 = arith.constant 1 : i32
    %224 = vector.broadcast %c1_i32 : i32 to vector<2x8xi32>
    %225 = arith.addi %219, %224 : vector<2x8xi32>
    %c3_i32_49 = arith.constant 3 : i32
    %226 = vector.broadcast %c3_i32_49 : i32 to vector<2x8xi32>
    %227 = arith.muli %225, %226 : vector<2x8xi32>
    %228 = arith.cmpi slt, %220, %227 : vector<2x8xi32>
    %229 = arith.andi %223, %228 : vector<2x8xi1>
    %230 = arith.extui %229 : vector<2x8xi1> to vector<2x8xi32>
    %231 = arith.sitofp %230 : vector<2x8xi32> to vector<2x8xf32>
    %232 = tpu.iota {dimensions = array<i32: 0>} : vector<8x4xi32>
    %233 = tpu.iota {dimensions = array<i32: 1>} : vector<8x4xi32>
    %c3_i32_50 = arith.constant 3 : i32
    %234 = vector.broadcast %c3_i32_50 : i32 to vector<8x4xi32>
    %235 = arith.cmpi eq, %233, %234 : vector<8x4xi32>
    %236 = arith.subi %232, %233 : vector<8x4xi32>
    %c0_i32 = arith.constant 0 : i32
    %237 = vector.broadcast %c0_i32 : i32 to vector<8x4xi32>
    %238 = arith.cmpi eq, %236, %237 : vector<8x4xi32>
    %239 = arith.ori %235, %238 : vector<8x4xi1>
    %240 = arith.subi %232, %233 : vector<8x4xi32>
    %c3_i32_51 = arith.constant 3 : i32
    %241 = vector.broadcast %c3_i32_51 : i32 to vector<8x4xi32>
    %242 = arith.cmpi eq, %240, %241 : vector<8x4xi32>
    %243 = arith.ori %239, %242 : vector<8x4xi1>
    %244 = arith.extui %243 : vector<8x4xi1> to vector<8x4xi32>
    %245 = arith.sitofp %244 : vector<8x4xi32> to vector<8x4xf32>
    %246 = vector.broadcast %218 : vector<8x1xf32> to vector<8x4xf32>
    %247 = arith.mulf %246, %245 : vector<8x4xf32>
    %cst_52 = arith.constant dense<0.000000e+00> : vector<2x4xf32>
    %248 = tpu.matmul %231, %247, %cst_52 {dimension_numbers = #tpu.dot_dimension_numbers<[1], [0], [0], [1], [0, 0, 1, 1], [], []>} : vector<2x8xf32>, vector<8x4xf32>, vector<2x4xf32> -> vector<2x4xf32>
    %249 = vector.extract_strided_slice %248 {offsets = [0, 0], sizes = [2, 3], strides = [1, 1]} : vector<2x4xf32> to vector<2x3xf32>
    %250 = vector.extract_strided_slice %248 {offsets = [0, 3], sizes = [2, 1], strides = [1, 1]} : vector<2x4xf32> to vector<2x1xf32>
    %251 = vector.broadcast %250 : vector<2x1xf32> to vector<2x3xf32>
    %252 = arith.divf %249, %251 : vector<2x3xf32>
    %c0_53 = arith.constant 0 : index
    %c0_54 = arith.constant 0 : index
    %253 = vector.load %arg3[%c0_53, %c0_54] : memref<2x3xf32, #tpu.memory_space<vmem>>, vector<2x3xf32>
    tpu.vector_store %arg3[%c0_53, %c0_54], %252 {strides = array<i32>} : memref<2x3xf32, #tpu.memory_space<vmem>>, vector<2x3xf32>,
    return
  }
}

</mosaic_0001>

<llo_original>
// kernel: simple_lstm_forward.1
$region0: #{simple_lstm_forward.1}
  #allocation0 [shape = 'u32[]', space=smem, size = 0x4, offset = 0x4, fixed_abs, tag = 'smem constant byte address 0x4 - core index']
  #allocation1 [shape = 'u32[144,128]{1,0:T(1,128)}', space=vmem, size = 0x12000, scoped, tag = 'internal scratch']
  %s0 = inlined_call_operand.vmem [shape: f32[8,128], index: 0, kind: input, shape index: {}]
  %s1 = inlined_call_operand.hbm [shape: f32[168,1024], index: 1, kind: input, shape index: {}]
  %s2 = inlined_call_operand.vmem [shape: f32[5,40,32], index: 2, kind: input, shape index: {}]
  %s3 = inlined_call_operand.hbm [shape: f32[2,3], index: 3, kind: output, shape index: {}]
  %s4 = sld [smem:[#allocation0]]
  $region26: #{simple_lstm_forward.1} parent=0
    _
  %s6 = ssub.s32 1, %s4
  %s7 = scalar_select 0, %s6, %s4
  $region1: #{simple_lstm_forward.1} parent=0
    #allocation2 [shape = 'u8[688128]{0}', space=vmem, size = 0xa8000, scoped, tag = 'input window, operand 1, single buffered']
    #allocation3 [shape = 's32[1]{0}', space=sflag, size = 0x4, scoped, tag = 'scoped memory for simple_lstm_forward.1']
    #allocation4 [shape = 's32[1]{0}', space=sflag, size = 0x4, scoped, tag = 'scoped memory for simple_lstm_forward.1']
    #allocation5 [shape = 'u8[1024]{0}', space=vmem, size = 0x400, scoped, tag = 'output window, operand 0, single buffered']
    %8 = vsyncpa [#allocation3], 0
    %9 = vsyncpa [#allocation4], 0
    // Predicated region
    $region2: #{simple_lstm_forward.1} parent=1 // pred_check
      _
    $region3: #{simple_lstm_forward.1} parent=1 // pred_check_branch
      %11 = sbr.rel (0) target = $region5
    $region4: #{simple_lstm_forward.1} parent=1 // pred_region
      _
    $region5: #{simple_lstm_forward.1} parent=1 // pred_fallthru
      _
    // Predicated region
    $region6: #{simple_lstm_forward.1} parent=1 // pred_check
      _
    $region7: #{simple_lstm_forward.1} parent=1 // pred_check_branch
      %13 = sbr.rel (0) target = $region9
    $region8: #{simple_lstm_forward.1} parent=1 // pred_region
      %s15 = ssub.s32 21504, 21504
      %16 = vsyncadd [#allocation3], %s15
      %s17 = sshll.u32 [#allocation2], 4
      %s18 = int_to_ptr.vmem [resolvable:$true] %s17
      %23 = dma.hbm_to_vmem [thread:$0]  %s1, 21504, %s18, [#allocation3], 1024, 1024, 64
    $region9: #{simple_lstm_forward.1} parent=1 // pred_fallthru
      _
    // Predicated region
    $region10: #{simple_lstm_forward.1} parent=1 // pred_check
      _
    $region11: #{simple_lstm_forward.1} parent=1 // pred_check_branch
      %25 = sbr.rel (0) target = $region13
    $region12: #{simple_lstm_forward.1} parent=1 // pred_region
      _
    $region13: #{simple_lstm_forward.1} parent=1 // pred_fallthru
      _
    // Predicated region
    $region14: #{simple_lstm_forward.1} parent=1 // pred_check
      _
    $region15: #{simple_lstm_forward.1} parent=1 // pred_check_branch
      %27 = sbr.rel (0) target = $region17
    $region16: #{simple_lstm_forward.1} parent=1 // pred_region
      %28 = dma.done [#allocation3], 21504
    $region17: #{simple_lstm_forward.1} parent=1 // pred_fallthru
      _
    %v29 = vld [vmem:[#allocation2] sm:$0xff]
    %v30 = vld [vmem:[#allocation2 + $0x8] sm:$0xff]
    %v31 = vld [vmem:[#allocation2 + $0x10] sm:$0xff]
    %v32 = vld [vmem:[#allocation2 + $0x18] sm:$0xff]
    %v33 = vld [vmem:[#allocation2 + $0x20] sm:$0xff]
    %v34 = vld [vmem:[#allocation2 + $0x28] sm:$0xff]
    %v35 = vld [vmem:[#allocation2 + $0x30] sm:$0xff]
    %v36 = vld [vmem:[#allocation2 + $0x38] sm:$0xff]
    %v37 = vld [vmem:[#allocation2 + $0x40] sm:$0xff]
    %v38 = vld [vmem:[#allocation2 + $0x48] sm:$0xff]
    %v39 = vld [vmem:[#allocation2 + $0x50] sm:$0xff]
    %v40 = vld [vmem:[#allocation2 + $0x58] sm:$0xff]
    %v41 = vld [vmem:[#allocation2 + $0x60] sm:$0xff]
    %v42 = vld [vmem:[#allocation2 + $0x68] sm:$0xff]
    %v43 = vld [vmem:[#allocation2 + $0x70] sm:$0xff]
    %v44 = vld [vmem:[#allocation2 + $0x78] sm:$0xff]
    %v45 = vld [vmem:[#allocation2 + $0x80] sm:$0xff]
    %v46 = vld [vmem:[#allocation2 + $0x88] sm:$0xff]
    %v47 = vld [vmem:[#allocation2 + $0x90] sm:$0xff]
    %v48 = vld [vmem:[#allocation2 + $0x98] sm:$0xff]
    %v49 = vld [vmem:[#allocation2 + $0xa0] sm:$0xff]
    %v50 = vld [vmem:[#allocation2 + $0xa8] sm:$0xff]
    %v51 = vld [vmem:[#allocation2 + $0xb0] sm:$0xff]
    %v52 = vld [vmem:[#allocation2 + $0xb8] sm:$0xff]
    %v53 = vld [vmem:[#allocation2 + $0xc0] sm:$0xff]
    %v54 = vld [vmem:[#allocation2 + $0xc8] sm:$0xff]
    %v55 = vld [vmem:[#allocation2 + $0xd0] sm:$0xff]
    %v56 = vld [vmem:[#allocation2 + $0xd8] sm:$0xff]
    %v57 = vld [vmem:[#allocation2 + $0xe0] sm:$0xff]
    %v58 = vld [vmem:[#allocation2 + $0xe8] sm:$0xff]
    %v59 = vld [vmem:[#allocation2 + $0xf0] sm:$0xff]
    %v60 = vld [vmem:[#allocation2 + $0xf8] sm:$0xff]
    %v61 = vld [vmem:[#allocation2 + $0x100] sm:$0xff]
    %v62 = vld [vmem:[#allocation2 + $0x108] sm:$0xff]
    %v63 = vld [vmem:[#allocation2 + $0x110] sm:$0xff]
    %v64 = vld [vmem:[#allocation2 + $0x118] sm:$0xff]
    %v65 = vld [vmem:[#allocation2 + $0x120] sm:$0xff]
    %v66 = vld [vmem:[#allocation2 + $0x128] sm:$0xff]
    %v67 = vld [vmem:[#allocation2 + $0x130] sm:$0xff]
    %v68 = vld [vmem:[#allocation2 + $0x138] sm:$0xff]
    %v69 = vld [vmem:[#allocation2 + $0x140] sm:$0xff]
    %v70 = vld [vmem:[#allocation2 + $0x148] sm:$0xff]
    %v71 = vld [vmem:[#allocation2 + $0x150] sm:$0xff]
    %v72 = vld [vmem:[#allocation2 + $0x158] sm:$0xff]
    %v73 = vld [vmem:[#allocation2 + $0x160] sm:$0xff]
    %v74 = vld [vmem:[#allocation2 + $0x168] sm:$0xff]
    %v75 = vld [vmem:[#allocation2 + $0x170] sm:$0xff]
    %v76 = vld [vmem:[#allocation2 + $0x178] sm:$0xff]
    %v77 = vld [vmem:[#allocation2 + $0x180] sm:$0xff]
    %v78 = vld [vmem:[#allocation2 + $0x188] sm:$0xff]
    %v79 = vld [vmem:[#allocation2 + $0x190] sm:$0xff]
    %v80 = vld [vmem:[#allocation2 + $0x198] sm:$0xff]
    %v81 = vld [vmem:[#allocation2 + $0x1a0] sm:$0xff]
    %v82 = vld [vmem:[#allocation2 + $0x1a8] sm:$0xff]
    %v83 = vld [vmem:[#allocation2 + $0x1b0] sm:$0xff]
    %v84 = vld [vmem:[#allocation2 + $0x1b8] sm:$0xff]
    %v85 = vld [vmem:[#allocation2 + $0x1c0] sm:$0xff]
    %v86 = vld [vmem:[#allocation2 + $0x1c8] sm:$0xff]
    %v87 = vld [vmem:[#allocation2 + $0x1d0] sm:$0xff]
    %v88 = vld [vmem:[#allocation2 + $0x1d8] sm:$0xff]
    %v89 = vld [vmem:[#allocation2 + $0x1e0] sm:$0xff]
    %v90 = vld [vmem:[#allocation2 + $0x1e8] sm:$0xff]
    %v91 = vld [vmem:[#allocation2 + $0x1f0] sm:$0xff]
    %v92 = vld [vmem:[#allocation2 + $0x1f8] sm:$0xff]
    %v93 = vld [vmem:[#allocation2 + $0x200] sm:$0xff]
    %v94 = vld [vmem:[#allocation2 + $0x208] sm:$0xff]
    %v95 = vld [vmem:[#allocation2 + $0x210] sm:$0xff]
    %v96 = vld [vmem:[#allocation2 + $0x218] sm:$0xff]
    %v97 = vld [vmem:[#allocation2 + $0x220] sm:$0xff]
    %v98 = vld [vmem:[#allocation2 + $0x228] sm:$0xff]
    %v99 = vld [vmem:[#allocation2 + $0x230] sm:$0xff]
    %v100 = vld [vmem:[#allocation2 + $0x238] sm:$0xff]
    %v101 = vld [vmem:[#allocation2 + $0x240] sm:$0xff]
    %v102 = vld [vmem:[#allocation2 + $0x248] sm:$0xff]
    %v103 = vld [vmem:[#allocation2 + $0x250] sm:$0xff]
    %v104 = vld [vmem:[#allocation2 + $0x258] sm:$0xff]
    %v105 = vld [vmem:[#allocation2 + $0x260] sm:$0xff]
    %v106 = vld [vmem:[#allocation2 + $0x268] sm:$0xff]
    %v107 = vld [vmem:[#allocation2 + $0x270] sm:$0xff]
    %v108 = vld [vmem:[#allocation2 + $0x278] sm:$0xff]
    %v109 = vld [vmem:[#allocation2 + $0x280] sm:$0xff]
    %v110 = vld [vmem:[#allocation2 + $0x288] sm:$0xff]
    %v111 = vld [vmem:[#allocation2 + $0x290] sm:$0xff]
    %v112 = vld [vmem:[#allocation2 + $0x298] sm:$0xff]
    %v113 = vld [vmem:[#allocation2 + $0x2a0] sm:$0xff]
    %v114 = vld [vmem:[#allocation2 + $0x2a8] sm:$0xff]
    %v115 = vld [vmem:[#allocation2 + $0x2b0] sm:$0xff]
    %v116 = vld [vmem:[#allocation2 + $0x2b8] sm:$0xff]
    %v117 = vld [vmem:[#allocation2 + $0x2c0] sm:$0xff]
    %v118 = vld [vmem:[#allocation2 + $0x2c8] sm:$0xff]
    %v119 = vld [vmem:[#allocation2 + $0x2d0] sm:$0xff]
    %v120 = vld [vmem:[#allocation2 + $0x2d8] sm:$0xff]
    %v121 = vld [vmem:[#allocation2 + $0x2e0] sm:$0xff]
    %v122 = vld [vmem:[#allocation2 + $0x2e8] sm:$0xff]
    %v123 = vld [vmem:[#allocation2 + $0x2f0] sm:$0xff]
    %v124 = vld [vmem:[#allocation2 + $0x2f8] sm:$0xff]
    %v125 = vld [vmem:[#allocation2 + $0x300] sm:$0xff]
    %v126 = vld [vmem:[#allocation2 + $0x308] sm:$0xff]
    %v127 = vld [vmem:[#allocation2 + $0x310] sm:$0xff]
    %v128 = vld [vmem:[#allocation2 + $0x318] sm:$0xff]
    %v129 = vld [vmem:[#allocation2 + $0x320] sm:$0xff]
    %v130 = vld [vmem:[#allocation2 + $0x328] sm:$0xff]
    %v131 = vld [vmem:[#allocation2 + $0x330] sm:$0xff]
    %v132 = vld [vmem:[#allocation2 + $0x338] sm:$0xff]
    %v133 = vld [vmem:[#allocation2 + $0x340] sm:$0xff]
    %v134 = vld [vmem:[#allocation2 + $0x348] sm:$0xff]
    %v135 = vld [vmem:[#allocation2 + $0x350] sm:$0xff]
    %v136 = vld [vmem:[#allocation2 + $0x358] sm:$0xff]
    %v137 = vld [vmem:[#allocation2 + $0x360] sm:$0xff]
    %v138 = vld [vmem:[#allocation2 + $0x368] sm:$0xff]
    %v139 = vld [vmem:[#allocation2 + $0x370] sm:$0xff]
    %v140 = vld [vmem:[#allocation2 + $0x378] sm:$0xff]
    %v141 = vld [vmem:[#allocation2 + $0x380] sm:$0xff]
    %v142 = vld [vmem:[#allocation2 + $0x388] sm:$0xff]
    %v143 = vld [vmem:[#allocation2 + $0x390] sm:$0xff]
    %v144 = vld [vmem:[#allocation2 + $0x398] sm:$0xff]
    %v145 = vld [vmem:[#allocation2 + $0x3a0] sm:$0xff]
    %v146 = vld [vmem:[#allocation2 + $0x3a8] sm:$0xff]
    %v147 = vld [vmem:[#allocation2 + $0x3b0] sm:$0xff]
    %v148 = vld [vmem:[#allocation2 + $0x3b8] sm:$0xff]
    %v149 = vld [vmem:[#allocation2 + $0x3c0] sm:$0xff]
    %v150 = vld [vmem:[#allocation2 + $0x3c8] sm:$0xff]
    %v151 = vld [vmem:[#allocation2 + $0x3d0] sm:$0xff]
    %v152 = vld [vmem:[#allocation2 + $0x3d8] sm:$0xff]
    %v153 = vld [vmem:[#allocation2 + $0x3e0] sm:$0xff]
    %v154 = vld [vmem:[#allocation2 + $0x3e8] sm:$0xff]
    %v155 = vld [vmem:[#allocation2 + $0x3f0] sm:$0xff]
    %v156 = vld [vmem:[#allocation2 + $0x3f8] sm:$0xff]
    %s157 = scalar_lea.vmem [#allocation2], 1024
    %v158 = vld [vmem:[%s157] ss:$8 sm:$0xf]
    %v159 = vld [vmem:[%s157] ss:$8 sm:$0xf0]
    %v160 = vor.u32 %v158, %v159
    %v161 = vld [vmem:[#allocation2 + $0x440] sm:$0xff]
    %v162 = vld [vmem:[#allocation2 + $0x480] sm:$0xff]
    %v163 = vld [vmem:[#allocation2 + $0x4c0] sm:$0xff]
    %v164 = vld [vmem:[#allocation2 + $0x500] sm:$0xff]
    %v165 = vld [vmem:[%s0] sm:$0xff]
    %v167 = vlaneseq
    %v168 = vshrl.u32 %v167, 7
    %v169 = vsub.s32 0, %v168
    %v170 = vrot.slane %v160, %v169
    %v171 = vlaneseq
    %v172 = vshrl.u32 %v171, 7
    %v173 = vsub.s32 1, %v172
    %v174 = vrot.slane %v160, %v173
    %v175 = vlaneseq
    %v176 = vshrl.u32 %v175, 7
    %v177 = vsub.s32 2, %v176
    %v178 = vrot.slane %v160, %v177
    %v179 = vlaneseq
    %v180 = vshrl.u32 %v179, 7
    %v181 = vsub.s32 3, %v180
    %v182 = vrot.slane %v160, %v181
    %v183 = vlaneseq
    %v184 = vshrl.u32 %v183, 7
    %v185 = vsub.s32 4, %v184
    %v186 = vrot.slane %v160, %v185
    %v187 = vlaneseq
    %v188 = vshrl.u32 %v187, 7
    %v189 = vsub.s32 5, %v188
    %v190 = vrot.slane %v160, %v189
    %v191 = vlaneseq
    %v192 = vshrl.u32 %v191, 7
    %v193 = vsub.s32 6, %v192
    %v194 = vrot.slane %v160, %v193
    %v195 = vlaneseq
    %v196 = vshrl.u32 %v195, 7
    %v197 = vsub.s32 7, %v196
    %v198 = vrot.slane %v160, %v197
    %207 = vmatprep.subr.mxu0 %v30
    %208 = vmatpush1.msra.mxu0 %v29
    %209 = vmatprep.subr.mxu0 %v38
    %210 = vmatpush1.msra.mxu0 %v37
    %211 = vmatprep.subr.mxu0 %v46
    %212 = vmatpush1.msra.mxu0 %v45
    %213 = vmatprep.subr.mxu0 %v54
    %214 = vmatpush1.msra.mxu0 %v53
    %215 = vmatprep.subr.mxu0 %v62
    %216 = vmatpush1.msra.mxu0 %v61
    %217 = vmatprep.subr.mxu0 %v70
    %218 = vmatpush1.msra.mxu0 %v69
    %219 = vmatprep.subr.mxu0 %v78
    %220 = vmatpush1.msra.mxu0 %v77
    %221 = vmatprep.subr.mxu0 %v86
    %222 = vmatpush1.msra.mxu0 %v85
    %223 = vmatprep.subr.mxu0 %v94
    %224 = vmatpush1.msra.mxu0 %v93
    %225 = vmatprep.subr.mxu0 %v102
    %226 = vmatpush1.msra.mxu0 %v101
    %227 = vmatprep.subr.mxu0 %v110
    %228 = vmatpush1.msra.mxu0 %v109
    %229 = vmatprep.subr.mxu0 %v118
    %230 = vmatpush1.msra.mxu0 %v117
    %231 = vmatprep.subr.mxu0 %v126
    %232 = vmatpush1.msra.mxu0 %v125
    %233 = vmatprep.subr.mxu0 %v134
    %234 = vmatpush1.msra.mxu0 %v133
    %235 = vmatprep.subr.mxu0 %v142
    %236 = vmatpush1.msra.mxu0 %v141
    %237 = vmatprep.subr.mxu0 %v150
    %238 = vmatpush1.msra.mxu0 %v149
    %239 = vmatprep.subr.mxu0 0.0
    %240 = vmatpush1.msra.mxu0 0.0
    %241 = vmatprep.subr.mxu0 0.0
    %242 = vmatpush1.msra.mxu0 0.0
    %243 = vmatprep.subr.mxu0 0.0
    %244 = vmatpush1.msra.mxu0 0.0
    %245 = vmatprep.subr.mxu0 0.0
    %246 = vmatpush1.msra.mxu0 0.0
    %247 = vmatprep.subr.mxu0 0.0
    %248 = vmatpush1.msra.mxu0 0.0
    %249 = vmatprep.subr.mxu0 0.0
    %250 = vmatpush1.msra.mxu0 0.0
    %251 = vmatprep.subr.mxu0 0.0
    %252 = vmatpush1.msra.mxu0 0.0
    %253 = vmatprep.subr.mxu0 0.0
    %254 = vmatpush1.msra.mxu0 0.0
    %255 = vmatprep.subr.mxu0 0.0
    %256 = vmatpush1.msra.mxu0 0.0
    %257 = vmatprep.subr.mxu0 0.0
    %258 = vmatpush1.msra.mxu0 0.0
    %259 = vmatprep.subr.mxu0 0.0
    %260 = vmatpush1.msra.mxu0 0.0
    %261 = vmatprep.subr.mxu0 0.0
    %262 = vmatpush1.msra.mxu0 0.0
    %263 = vmatprep.subr.mxu0 0.0
    %264 = vmatpush1.msra.mxu0 0.0
    %265 = vmatprep.subr.mxu0 0.0
    %266 = vmatpush1.msra.mxu0 0.0
    %267 = vmatprep.subr.mxu0 0.0
    %268 = vmatpush1.msra.mxu0 0.0
    %269 = vmatprep.subr.mxu0 0.0
    %270 = vmatpush1.msra.mxu0 0.0
    %271 = vmatprep.mubr.f32.mxu0 0.0
    %272 = vmatmul.mubr.f32.gmra.mrb[0].mxu0 %v165
    %v273 = vpop.f32.mrb[0].mxu0
    %v274 = vadd.f32 %v170, %v273
    %v275 = vpop.f32.mrb[0].mxu0
    %v276 = vadd.f32 %v174, %v275
    %277 = vdwg.mxu0
    %278 = vmatprep.subr.mxu0 %v32
    %279 = vmatpush1.msra.mxu0 %v31
    %280 = vmatprep.subr.mxu0 %v40
    %281 = vmatpush1.msra.mxu0 %v39
    %282 = vmatprep.subr.mxu0 %v48
    %283 = vmatpush1.msra.mxu0 %v47
    %284 = vmatprep.subr.mxu0 %v56
    %285 = vmatpush1.msra.mxu0 %v55
    %286 = vmatprep.subr.mxu0 %v64
    %287 = vmatpush1.msra.mxu0 %v63
    %288 = vmatprep.subr.mxu0 %v72
    %289 = vmatpush1.msra.mxu0 %v71
    %290 = vmatprep.subr.mxu0 %v80
    %291 = vmatpush1.msra.mxu0 %v79
    %292 = vmatprep.subr.mxu0 %v88
    %293 = vmatpush1.msra.mxu0 %v87
    %294 = vmatprep.subr.mxu0 %v96
    %295 = vmatpush1.msra.mxu0 %v95
    %296 = vmatprep.subr.mxu0 %v104
    %297 = vmatpush1.msra.mxu0 %v103
    %298 = vmatprep.subr.mxu0 %v112
    %299 = vmatpush1.msra.mxu0 %v111
    %300 = vmatprep.subr.mxu0 %v120
    %301 = vmatpush1.msra.mxu0 %v119
    %302 = vmatprep.subr.mxu0 %v128
    %303 = vmatpush1.msra.mxu0 %v127
    %304 = vmatprep.subr.mxu0 %v136
    %305 = vmatpush1.msra.mxu0 %v135
    %306 = vmatprep.subr.mxu0 %v144
    %307 = vmatpush1.msra.mxu0 %v143
    %308 = vmatprep.subr.mxu0 %v152
    %309 = vmatpush1.msra.mxu0 %v151
    %310 = vmatprep.subr.mxu0 0.0
    %311 = vmatpush1.msra.mxu0 0.0
    %312 = vmatprep.subr.mxu0 0.0
    %313 = vmatpush1.msra.mxu0 0.0
    %314 = vmatprep.subr.mxu0 0.0
    %315 = vmatpush1.msra.mxu0 0.0
    %316 = vmatprep.subr.mxu0 0.0
    %317 = vmatpush1.msra.mxu0 0.0
    %318 = vmatprep.subr.mxu0 0.0
    %319 = vmatpush1.msra.mxu0 0.0
    %320 = vmatprep.subr.mxu0 0.0
    %321 = vmatpush1.msra.mxu0 0.0
    %322 = vmatprep.subr.mxu0 0.0
    %323 = vmatpush1.msra.mxu0 0.0
    %324 = vmatprep.subr.mxu0 0.0
    %325 = vmatpush1.msra.mxu0 0.0
    %326 = vmatprep.subr.mxu0 0.0
    %327 = vmatpush1.msra.mxu0 0.0
    %328 = vmatprep.subr.mxu0 0.0
    %329 = vmatpush1.msra.mxu0 0.0
    %330 = vmatprep.subr.mxu0 0.0
    %331 = vmatpush1.msra.mxu0 0.0
    %332 = vmatprep.subr.mxu0 0.0
    %333 = vmatpush1.msra.mxu0 0.0
    %334 = vmatprep.subr.mxu0 0.0
    %335 = vmatpush1.msra.mxu0 0.0
    %336 = vmatprep.subr.mxu0 0.0
    %337 = vmatpush1.msra.mxu0 0.0
    %338 = vmatprep.subr.mxu0 0.0
    %339 = vmatpush1.msra.mxu0 0.0
    %340 = vmatprep.subr.mxu0 0.0
    %341 = vmatpush1.msra.mxu0 0.0
    %342 = vmatprep.mubr.f32.mxu0 0.0
    %343 = vmatmul.mubr.f32.gmra.mrb[0].mxu0 %v165
    %v344 = vpop.f32.mrb[0].mxu0
    %v345 = vadd.f32 %v178, %v344
    %v346 = vpop.f32.mrb[0].mxu0
    %v347 = vadd.f32 %v182, %v346
    %348 = vdwg.mxu0
    %349 = vmatprep.subr.mxu0 %v34
    %350 = vmatpush1.msra.mxu0 %v33
    %351 = vmatprep.subr.mxu0 %v42
    %352 = vmatpush1.msra.mxu0 %v41
    %353 = vmatprep.subr.mxu0 %v50
    %354 = vmatpush1.msra.mxu0 %v49
    %355 = vmatprep.subr.mxu0 %v58
    %356 = vmatpush1.msra.mxu0 %v57
    %357 = vmatprep.subr.mxu0 %v66
    %358 = vmatpush1.msra.mxu0 %v65
    %359 = vmatprep.subr.mxu0 %v74
    %360 = vmatpush1.msra.mxu0 %v73
    %361 = vmatprep.subr.mxu0 %v82
    %362 = vmatpush1.msra.mxu0 %v81
    %363 = vmatprep.subr.mxu0 %v90
    %364 = vmatpush1.msra.mxu0 %v89
    %365 = vmatprep.subr.mxu0 %v98
    %366 = vmatpush1.msra.mxu0 %v97
    %367 = vmatprep.subr.mxu0 %v106
    %368 = vmatpush1.msra.mxu0 %v105
    %369 = vmatprep.subr.mxu0 %v114
    %370 = vmatpush1.msra.mxu0 %v113
    %371 = vmatprep.subr.mxu0 %v122
    %372 = vmatpush1.msra.mxu0 %v121
    %373 = vmatprep.subr.mxu0 %v130
    %374 = vmatpush1.msra.mxu0 %v129
    %375 = vmatprep.subr.mxu0 %v138
    %376 = vmatpush1.msra.mxu0 %v137
    %377 = vmatprep.subr.mxu0 %v146
    %378 = vmatpush1.msra.mxu0 %v145
    %379 = vmatprep.subr.mxu0 %v154
    %380 = vmatpush1.msra.mxu0 %v153
    %381 = vmatprep.subr.mxu0 0.0
    %382 = vmatpush1.msra.mxu0 0.0
    %383 = vmatprep.subr.mxu0 0.0
    %384 = vmatpush1.msra.mxu0 0.0
    %385 = vmatprep.subr.mxu0 0.0
    %386 = vmatpush1.msra.mxu0 0.0
    %387 = vmatprep.subr.mxu0 0.0
    %388 = vmatpush1.msra.mxu0 0.0
    %389 = vmatprep.subr.mxu0 0.0
    %390 = vmatpush1.msra.mxu0 0.0
    %391 = vmatprep.subr.mxu0 0.0
    %392 = vmatpush1.msra.mxu0 0.0
    %393 = vmatprep.subr.mxu0 0.0
    %394 = vmatpush1.msra.mxu0 0.0
    %395 = vmatprep.subr.mxu0 0.0
    %396 = vmatpush1.msra.mxu0 0.0
    %397 = vmatprep.subr.mxu0 0.0
    %398 = vmatpush1.msra.mxu0 0.0
    %399 = vmatprep.subr.mxu0 0.0
    %400 = vmatpush1.msra.mxu0 0.0
    %401 = vmatprep.subr.mxu0 0.0
    %402 = vmatpush1.msra.mxu0 0.0
    %403 = vmatprep.subr.mxu0 0.0
    %404 = vmatpush1.msra.mxu0 0.0
    %405 = vmatprep.subr.mxu0 0.0
    %406 = vmatpush1.msra.mxu0 0.0
    %407 = vmatprep.subr.mxu0 0.0
    %408 = vmatpush1.msra.mxu0 0.0
    %409 = vmatprep.subr.mxu0 0.0
    %410 = vmatpush1.msra.mxu0 0.0
    %411 = vmatprep.subr.mxu0 0.0
    %412 = vmatpush1.msra.mxu0 0.0
    %413 = vmatprep.mubr.f32.mxu0 0.0
    %414 = vmatmul.mubr.f32.gmra.mrb[0].mxu0 %v165
    %v415 = vpop.f32.mrb[0].mxu0
    %v416 = vadd.f32 %v186, %v415
    %v417 = vpop.f32.mrb[0].mxu0
    %v418 = vadd.f32 %v190, %v417
    %419 = vdwg.mxu0
    %420 = vmatprep.subr.mxu0 %v36
    %421 = vmatpush1.msra.mxu0 %v35
    %422 = vmatprep.subr.mxu0 %v44
    %423 = vmatpush1.msra.mxu0 %v43
    %424 = vmatprep.subr.mxu0 %v52
    %425 = vmatpush1.msra.mxu0 %v51
    %426 = vmatprep.subr.mxu0 %v60
    %427 = vmatpush1.msra.mxu0 %v59
    %428 = vmatprep.subr.mxu0 %v68
    %429 = vmatpush1.msra.mxu0 %v67
    %430 = vmatprep.subr.mxu0 %v76
    %431 = vmatpush1.msra.mxu0 %v75
    %432 = vmatprep.subr.mxu0 %v84
    %433 = vmatpush1.msra.mxu0 %v83
    %434 = vmatprep.subr.mxu0 %v92
    %435 = vmatpush1.msra.mxu0 %v91
    %436 = vmatprep.subr.mxu0 %v100
    %437 = vmatpush1.msra.mxu0 %v99
    %438 = vmatprep.subr.mxu0 %v108
    %439 = vmatpush1.msra.mxu0 %v107
    %440 = vmatprep.subr.mxu0 %v116
    %441 = vmatpush1.msra.mxu0 %v115
    %442 = vmatprep.subr.mxu0 %v124
    %443 = vmatpush1.msra.mxu0 %v123
    %444 = vmatprep.subr.mxu0 %v132
    %445 = vmatpush1.msra.mxu0 %v131
    %446 = vmatprep.subr.mxu0 %v140
    %447 = vmatpush1.msra.mxu0 %v139
    %448 = vmatprep.subr.mxu0 %v148
    %449 = vmatpush1.msra.mxu0 %v147
    %450 = vmatprep.subr.mxu0 %v156
    %451 = vmatpush1.msra.mxu0 %v155
    %452 = vmatprep.subr.mxu0 0.0
    %453 = vmatpush1.msra.mxu0 0.0
    %454 = vmatprep.subr.mxu0 0.0
    %455 = vmatpush1.msra.mxu0 0.0
    %456 = vmatprep.subr.mxu0 0.0
    %457 = vmatpush1.msra.mxu0 0.0
    %458 = vmatprep.subr.mxu0 0.0
    %459 = vmatpush1.msra.mxu0 0.0
    %460 = vmatprep.subr.mxu0 0.0
    %461 = vmatpush1.msra.mxu0 0.0
    %462 = vmatprep.subr.mxu0 0.0
    %463 = vmatpush1.msra.mxu0 0.0
    %464 = vmatprep.subr.mxu0 0.0
    %465 = vmatpush1.msra.mxu0 0.0
    %466 = vmatprep.subr.mxu0 0.0
    %467 = vmatpush1.msra.mxu0 0.0
    %468 = vmatprep.subr.mxu0 0.0
    %469 = vmatpush1.msra.mxu0 0.0
    %470 = vmatprep.subr.mxu0 0.0
    %471 = vmatpush1.msra.mxu0 0.0
    %472 = vmatprep.subr.mxu0 0.0
    %473 = vmatpush1.msra.mxu0 0.0
    %474 = vmatprep.subr.mxu0 0.0
    %475 = vmatpush1.msra.mxu0 0.0
    %476 = vmatprep.subr.mxu0 0.0
    %477 = vmatpush1.msra.mxu0 0.0
    %478 = vmatprep.subr.mxu0 0.0
    %479 = vmatpush1.msra.mxu0 0.0
    %480 = vmatprep.subr.mxu0 0.0
    %481 = vmatpush1.msra.mxu0 0.0
    %482 = vmatprep.subr.mxu0 0.0
    %483 = vmatpush1.msra.mxu0 0.0
    %484 = vmatprep.mubr.f32.mxu0 0.0
    %485 = vmatmul.mubr.f32.gmra.mrb[0].mxu0 %v165
    %v486 = vpop.f32.mrb[0].mxu0
    %v487 = vadd.f32 %v194, %v486
    %v488 = vpop.f32.mrb[0].mxu0
    %v489 = vadd.f32 %v198, %v488
    %490 = vdwg.mxu0
    %vm491 = vcmask 261120
    %v493 = vsel %vm491, 0.0, 0
    %495 = vmatprep.subr.mxu0 0.0
    %496 = vmatpush1.msra.mxu0 %v161
    %497 = vmatprep.subr.mxu0 0.0
    %498 = vmatpush1.msra.mxu0 %v162
    %499 = vmatprep.subr.mxu0 0.0
    %500 = vmatpush1.msra.mxu0 %v163
    %501 = vmatprep.subr.mxu0 0.0
    %502 = vmatpush1.msra.mxu0 %v164
    %503 = vmatprep.subr.mxu0 0.0
    %504 = vmatpush1.msra.mxu0 0.0
    %505 = vmatprep.subr.mxu0 0.0
    %506 = vmatpush1.msra.mxu0 0.0
    %507 = vmatprep.subr.mxu0 0.0
    %508 = vmatpush1.msra.mxu0 0.0
    %509 = vmatprep.subr.mxu0 0.0
    %510 = vmatpush1.msra.mxu0 0.0
    %511 = vmatprep.subr.mxu0 0.0
    %512 = vmatpush1.msra.mxu0 0.0
    %513 = vmatprep.subr.mxu0 0.0
    %514 = vmatpush1.msra.mxu0 0.0
    %515 = vmatprep.subr.mxu0 0.0
    %516 = vmatpush1.msra.mxu0 0.0
    %517 = vmatprep.subr.mxu0 0.0
    %518 = vmatpush1.msra.mxu0 0.0
    %519 = vmatprep.subr.mxu0 0.0
    %520 = vmatpush1.msra.mxu0 0.0
    %521 = vmatprep.subr.mxu0 0.0
    %522 = vmatpush1.msra.mxu0 0.0
    %523 = vmatprep.subr.mxu0 0.0
    %524 = vmatpush1.msra.mxu0 0.0
    %525 = vmatprep.subr.mxu0 0.0
    %526 = vmatpush1.msra.mxu0 0.0
    %527 = vmatprep.subr.mxu0 0.0
    %528 = vmatpush1.msra.mxu0 0.0
    %529 = vmatprep.subr.mxu0 0.0
    %530 = vmatpush1.msra.mxu0 0.0
    %531 = vmatprep.subr.mxu0 0.0
    %532 = vmatpush1.msra.mxu0 0.0
    %533 = vmatprep.subr.mxu0 0.0
    %534 = vmatpush1.msra.mxu0 0.0
    %535 = vmatprep.subr.mxu0 0.0
    %536 = vmatpush1.msra.mxu0 0.0
    %537 = vmatprep.subr.mxu0 0.0
    %538 = vmatpush1.msra.mxu0 0.0
    %539 = vmatprep.subr.mxu0 0.0
    %540 = vmatpush1.msra.mxu0 0.0
    %541 = vmatprep.subr.mxu0 0.0
    %542 = vmatpush1.msra.mxu0 0.0
    %543 = vmatprep.subr.mxu0 0.0
    %544 = vmatpush1.msra.mxu0 0.0
    %545 = vmatprep.subr.mxu0 0.0
    %546 = vmatpush1.msra.mxu0 0.0
    %547 = vmatprep.subr.mxu0 0.0
    %548 = vmatpush1.msra.mxu0 0.0
    %549 = vmatprep.subr.mxu0 0.0
    %550 = vmatpush1.msra.mxu0 0.0
    %551 = vmatprep.subr.mxu0 0.0
    %552 = vmatpush1.msra.mxu0 0.0
    %553 = vmatprep.subr.mxu0 0.0
    %554 = vmatpush1.msra.mxu0 0.0
    %555 = vmatprep.subr.mxu0 0.0
    %556 = vmatpush1.msra.mxu0 0.0
    %557 = vmatprep.subr.mxu0 0.0
    %558 = vmatpush1.msra.mxu0 0.0
    %559 = vmatprep.mubr.f32.mxu0 0.0
    %560 = vmatmul.mubr.f32.gmra.mrb[0].mxu0 %v493
    %v561 = vpop.f32.mrb[0].mxu0
    %v562 = vadd.f32 0.0, %v561
    %v563 = vpop.f32.mrb[0].mxu0
    %564 = vdwg.mxu0
    %v565 = vadd.f32 %v274, %v562
    %v566 = vxor.u32 %v565, 2147483648
    %v567 = vmul.f32 %v566, 1.442695
    %v568 = vpow.pop %v567
    %v569 = vadd.f32 %v568, 1.0
    %v570 = vrcp.pop %v569
    %v571 = vmul.f32 1.0, %v570
    %v572 = vtanh.pop %v565
    %v573 = vmul.f32 %v571, 0.0
    %575 = vrot.lane.b32.xlu0 %v572, 64
    %v576 = vpop.permute.xlu0 %575
    %v578 = vmul.f32 %v571, %v576
    %580 = vrot.lane.b32.xlu0 %v578, 32
    %v581 = vpop.permute.xlu0 %580
    %v583 = vadd.f32 %v573, %v581
    %v584 = vtanh.pop %v583
    %586 = vrot.lane.b32.xlu0 %v584, 64
    %v587 = vpop.permute.xlu0 %586
    %v589 = vmul.f32 %v571, %v587
    %591 = vrot.lane.b32.xlu0 %v589, 32
    %v592 = vpop.permute.xlu0 %591
    %v593 = vsel %vm491, %v592, 0
    %595 = vmatprep.subr.mxu0 0.0
    %596 = vmatpush1.msra.mxu0 %v161
    %597 = vmatprep.subr.mxu0 0.0
    %598 = vmatpush1.msra.mxu0 %v162
    %599 = vmatprep.subr.mxu0 0.0
    %600 = vmatpush1.msra.mxu0 %v163
    %601 = vmatprep.subr.mxu0 0.0
    %602 = vmatpush1.msra.mxu0 %v164
    %603 = vmatprep.subr.mxu0 0.0
    %604 = vmatpush1.msra.mxu0 0.0
    %605 = vmatprep.subr.mxu0 0.0
    %606 = vmatpush1.msra.mxu0 0.0
    %607 = vmatprep.subr.mxu0 0.0
    %608 = vmatpush1.msra.mxu0 0.0
    %609 = vmatprep.subr.mxu0 0.0
    %610 = vmatpush1.msra.mxu0 0.0
    %611 = vmatprep.subr.mxu0 0.0
    %612 = vmatpush1.msra.mxu0 0.0
    %613 = vmatprep.subr.mxu0 0.0
    %614 = vmatpush1.msra.mxu0 0.0
    %615 = vmatprep.subr.mxu0 0.0
    %616 = vmatpush1.msra.mxu0 0.0
    %617 = vmatprep.subr.mxu0 0.0
    %618 = vmatpush1.msra.mxu0 0.0
    %619 = vmatprep.subr.mxu0 0.0
    %620 = vmatpush1.msra.mxu0 0.0
    %621 = vmatprep.subr.mxu0 0.0
    %622 = vmatpush1.msra.mxu0 0.0
    %623 = vmatprep.subr.mxu0 0.0
    %624 = vmatpush1.msra.mxu0 0.0
    %625 = vmatprep.subr.mxu0 0.0
    %626 = vmatpush1.msra.mxu0 0.0
    %627 = vmatprep.subr.mxu0 0.0
    %628 = vmatpush1.msra.mxu0 0.0
    %629 = vmatprep.subr.mxu0 0.0
    %630 = vmatpush1.msra.mxu0 0.0
    %631 = vmatprep.subr.mxu0 0.0
    %632 = vmatpush1.msra.mxu0 0.0
    %633 = vmatprep.subr.mxu0 0.0
    %634 = vmatpush1.msra.mxu0 0.0
    %635 = vmatprep.subr.mxu0 0.0
    %636 = vmatpush1.msra.mxu0 0.0
    %637 = vmatprep.subr.mxu0 0.0
    %638 = vmatpush1.msra.mxu0 0.0
    %639 = vmatprep.subr.mxu0 0.0
    %640 = vmatpush1.msra.mxu0 0.0
    %641 = vmatprep.subr.mxu0 0.0
    %642 = vmatpush1.msra.mxu0 0.0
    %643 = vmatprep.subr.mxu0 0.0
    %644 = vmatpush1.msra.mxu0 0.0
    %645 = vmatprep.subr.mxu0 0.0
    %646 = vmatpush1.msra.mxu0 0.0
    %647 = vmatprep.subr.mxu0 0.0
    %648 = vmatpush1.msra.mxu0 0.0
    %649 = vmatprep.subr.mxu0 0.0
    %650 = vmatpush1.msra.mxu0 0.0
    %651 = vmatprep.subr.mxu0 0.0
    %652 = vmatpush1.msra.mxu0 0.0
    %653 = vmatprep.subr.mxu0 0.0
    %654 = vmatpush1.msra.mxu0 0.0
    %655 = vmatprep.subr.mxu0 0.0
    %656 = vmatpush1.msra.mxu0 0.0
    %657 = vmatprep.subr.mxu0 0.0
    %658 = vmatpush1.msra.mxu0 0.0
    %659 = vmatprep.mubr.f32.mxu0 0.0
    %660 = vmatmul.mubr.f32.gmra.mrb[0].mxu0 %v593
    %v661 = vpop.f32.mrb[0].mxu0
    %v662 = vadd.f32 0.0, %v661
    %v663 = vpop.f32.mrb[0].mxu0
    %664 = vdwg.mxu0
    %v665 = vadd.f32 %v276, %v662
    %v666 = vxor.u32 %v665, 2147483648
    %v667 = vmul.f32 %v666, 1.442695
    %v668 = vpow.pop %v667
    %v669 = vadd.f32 %v668, 1.0
    %v670 = vrcp.pop %v669
    %v671 = vmul.f32 1.0, %v670
    %v672 = vtanh.pop %v665
    %v673 = vmul.f32 %v671, %v583
    %675 = vrot.lane.b32.xlu0 %v672, 64
    %v676 = vpop.permute.xlu0 %675
    %v678 = vmul.f32 %v671, %v676
    %680 = vrot.lane.b32.xlu0 %v678, 32
    %v681 = vpop.permute.xlu0 %680
    %v683 = vadd.f32 %v673, %v681
    %v684 = vtanh.pop %v683
    %686 = vrot.lane.b32.xlu0 %v684, 64
    %v687 = vpop.permute.xlu0 %686
    %v689 = vmul.f32 %v671, %v687
    %691 = vrot.lane.b32.xlu0 %v689, 32
    %v692 = vpop.permute.xlu0 %691
    %v693 = vsel %vm491, %v692, 0
    %695 = vmatprep.subr.mxu0 0.0
    %696 = vmatpush1.msra.mxu0 %v161
    %697 = vmatprep.subr.mxu0 0.0
    %698 = vmatpush1.msra.mxu0 %v162
    %699 = vmatprep.subr.mxu0 0.0
    %700 = vmatpush1.msra.mxu0 %v163
    %701 = vmatprep.subr.mxu0 0.0
    %702 = vmatpush1.msra.mxu0 %v164
    %703 = vmatprep.subr.mxu0 0.0
    %704 = vmatpush1.msra.mxu0 0.0
    %705 = vmatprep.subr.mxu0 0.0
    %706 = vmatpush1.msra.mxu0 0.0
    %707 = vmatprep.subr.mxu0 0.0
    %708 = vmatpush1.msra.mxu0 0.0
    %709 = vmatprep.subr.mxu0 0.0
    %710 = vmatpush1.msra.mxu0 0.0
    %711 = vmatprep.subr.mxu0 0.0
    %712 = vmatpush1.msra.mxu0 0.0
    %713 = vmatprep.subr.mxu0 0.0
    %714 = vmatpush1.msra.mxu0 0.0
    %715 = vmatprep.subr.mxu0 0.0
    %716 = vmatpush1.msra.mxu0 0.0
    %717 = vmatprep.subr.mxu0 0.0
    %718 = vmatpush1.msra.mxu0 0.0
    %719 = vmatprep.subr.mxu0 0.0
    %720 = vmatpush1.msra.mxu0 0.0
    %721 = vmatprep.subr.mxu0 0.0
    %722 = vmatpush1.msra.mxu0 0.0
    %723 = vmatprep.subr.mxu0 0.0
    %724 = vmatpush1.msra.mxu0 0.0
    %725 = vmatprep.subr.mxu0 0.0
    %726 = vmatpush1.msra.mxu0 0.0
    %727 = vmatprep.subr.mxu0 0.0
    %728 = vmatpush1.msra.mxu0 0.0
    %729 = vmatprep.subr.mxu0 0.0
    %730 = vmatpush1.msra.mxu0 0.0
    %731 = vmatprep.subr.mxu0 0.0
    %732 = vmatpush1.msra.mxu0 0.0
    %733 = vmatprep.subr.mxu0 0.0
    %734 = vmatpush1.msra.mxu0 0.0
    %735 = vmatprep.subr.mxu0 0.0
    %736 = vmatpush1.msra.mxu0 0.0
    %737 = vmatprep.subr.mxu0 0.0
    %738 = vmatpush1.msra.mxu0 0.0
    %739 = vmatprep.subr.mxu0 0.0
    %740 = vmatpush1.msra.mxu0 0.0
    %741 = vmatprep.subr.mxu0 0.0
    %742 = vmatpush1.msra.mxu0 0.0
    %743 = vmatprep.subr.mxu0 0.0
    %744 = vmatpush1.msra.mxu0 0.0
    %745 = vmatprep.subr.mxu0 0.0
    %746 = vmatpush1.msra.mxu0 0.0
    %747 = vmatprep.subr.mxu0 0.0
    %748 = vmatpush1.msra.mxu0 0.0
    %749 = vmatprep.subr.mxu0 0.0
    %750 = vmatpush1.msra.mxu0 0.0
    %751 = vmatprep.subr.mxu0 0.0
    %752 = vmatpush1.msra.mxu0 0.0
    %753 = vmatprep.subr.mxu0 0.0
    %754 = vmatpush1.msra.mxu0 0.0
    %755 = vmatprep.subr.mxu0 0.0
    %756 = vmatpush1.msra.mxu0 0.0
    %757 = vmatprep.subr.mxu0 0.0
    %758 = vmatpush1.msra.mxu0 0.0
    %759 = vmatprep.mubr.f32.mxu0 0.0
    %760 = vmatmul.mubr.f32.gmra.mrb[0].mxu0 %v693
    %v761 = vpop.f32.mrb[0].mxu0
    %v762 = vadd.f32 0.0, %v761
    %v763 = vpop.f32.mrb[0].mxu0
    %764 = vdwg.mxu0
    %v765 = vadd.f32 %v345, %v762
    %v766 = vxor.u32 %v765, 2147483648
    %v767 = vmul.f32 %v766, 1.442695
    %v768 = vpow.pop %v767
    %v769 = vadd.f32 %v768, 1.0
    %v770 = vrcp.pop %v769
    %v771 = vmul.f32 1.0, %v770
    %v772 = vtanh.pop %v765
    %v773 = vmul.f32 %v771, %v683
    %775 = vrot.lane.b32.xlu0 %v772, 64
    %v776 = vpop.permute.xlu0 %775
    %v778 = vmul.f32 %v771, %v776
    %780 = vrot.lane.b32.xlu0 %v778, 32
    %v781 = vpop.permute.xlu0 %780
    %v783 = vadd.f32 %v773, %v781
    %v784 = vtanh.pop %v783
    %786 = vrot.lane.b32.xlu0 %v784, 64
    %v787 = vpop.permute.xlu0 %786
    %v789 = vmul.f32 %v771, %v787
    %791 = vrot.lane.b32.xlu0 %v789, 32
    %v792 = vpop.permute.xlu0 %791
    %v793 = vsel %vm491, %v792, 0
    %795 = vmatprep.subr.mxu0 0.0
    %796 = vmatpush1.msra.mxu0 %v161
    %797 = vmatprep.subr.mxu0 0.0
    %798 = vmatpush1.msra.mxu0 %v162
    %799 = vmatprep.subr.mxu0 0.0
    %800 = vmatpush1.msra.mxu0 %v163
    %801 = vmatprep.subr.mxu0 0.0
    %802 = vmatpush1.msra.mxu0 %v164
    %803 = vmatprep.subr.mxu0 0.0
    %804 = vmatpush1.msra.mxu0 0.0
    %805 = vmatprep.subr.mxu0 0.0
    %806 = vmatpush1.msra.mxu0 0.0
    %807 = vmatprep.subr.mxu0 0.0
    %808 = vmatpush1.msra.mxu0 0.0
    %809 = vmatprep.subr.mxu0 0.0
    %810 = vmatpush1.msra.mxu0 0.0
    %811 = vmatprep.subr.mxu0 0.0
    %812 = vmatpush1.msra.mxu0 0.0
    %813 = vmatprep.subr.mxu0 0.0
    %814 = vmatpush1.msra.mxu0 0.0
    %815 = vmatprep.subr.mxu0 0.0
    %816 = vmatpush1.msra.mxu0 0.0
    %817 = vmatprep.subr.mxu0 0.0
    %818 = vmatpush1.msra.mxu0 0.0
    %819 = vmatprep.subr.mxu0 0.0
    %820 = vmatpush1.msra.mxu0 0.0
    %821 = vmatprep.subr.mxu0 0.0
    %822 = vmatpush1.msra.mxu0 0.0
    %823 = vmatprep.subr.mxu0 0.0
    %824 = vmatpush1.msra.mxu0 0.0
    %825 = vmatprep.subr.mxu0 0.0
    %826 = vmatpush1.msra.mxu0 0.0
    %827 = vmatprep.subr.mxu0 0.0
    %828 = vmatpush1.msra.mxu0 0.0
    %829 = vmatprep.subr.mxu0 0.0
    %830 = vmatpush1.msra.mxu0 0.0
    %831 = vmatprep.subr.mxu0 0.0
    %832 = vmatpush1.msra.mxu0 0.0
    %833 = vmatprep.subr.mxu0 0.0
    %834 = vmatpush1.msra.mxu0 0.0
    %835 = vmatprep.subr.mxu0 0.0
    %836 = vmatpush1.msra.mxu0 0.0
    %837 = vmatprep.subr.mxu0 0.0
    %838 = vmatpush1.msra.mxu0 0.0
    %839 = vmatprep.subr.mxu0 0.0
    %840 = vmatpush1.msra.mxu0 0.0
    %841 = vmatprep.subr.mxu0 0.0
    %842 = vmatpush1.msra.mxu0 0.0
    %843 = vmatprep.subr.mxu0 0.0
    %844 = vmatpush1.msra.mxu0 0.0
    %845 = vmatprep.subr.mxu0 0.0
    %846 = vmatpush1.msra.mxu0 0.0
    %847 = vmatprep.subr.mxu0 0.0
    %848 = vmatpush1.msra.mxu0 0.0
    %849 = vmatprep.subr.mxu0 0.0
    %850 = vmatpush1.msra.mxu0 0.0
    %851 = vmatprep.subr.mxu0 0.0
    %852 = vmatpush1.msra.mxu0 0.0
    %853 = vmatprep.subr.mxu0 0.0
    %854 = vmatpush1.msra.mxu0 0.0
    %855 = vmatprep.subr.mxu0 0.0
    %856 = vmatpush1.msra.mxu0 0.0
    %857 = vmatprep.subr.mxu0 0.0
    %858 = vmatpush1.msra.mxu0 0.0
    %859 = vmatprep.mubr.f32.mxu0 0.0
    %860 = vmatmul.mubr.f32.gmra.mrb[0].mxu0 %v793
    %v861 = vpop.f32.mrb[0].mxu0
    %v862 = vadd.f32 0.0, %v861
    %v863 = vpop.f32.mrb[0].mxu0
    %864 = vdwg.mxu0
    %v865 = vadd.f32 %v347, %v862
    %v866 = vxor.u32 %v865, 2147483648
    %v867 = vmul.f32 %v866, 1.442695
    %v868 = vpow.pop %v867
    %v869 = vadd.f32 %v868, 1.0
    %v870 = vrcp.pop %v869
    %v871 = vmul.f32 1.0, %v870
    %v872 = vtanh.pop %v865
    %v873 = vmul.f32 %v871, %v783
    %875 = vrot.lane.b32.xlu0 %v872, 64
    %v876 = vpop.permute.xlu0 %875
    %v878 = vmul.f32 %v871, %v876
    %880 = vrot.lane.b32.xlu0 %v878, 32
    %v881 = vpop.permute.xlu0 %880
    %v883 = vadd.f32 %v873, %v881
    %v884 = vtanh.pop %v883
    %886 = vrot.lane.b32.xlu0 %v884, 64
    %v887 = vpop.permute.xlu0 %886
    %v889 = vmul.f32 %v871, %v887
    %891 = vrot.lane.b32.xlu0 %v889, 32
    %v892 = vpop.permute.xlu0 %891
    %v893 = vsel %vm491, %v892, 0
    %895 = vmatprep.subr.mxu0 0.0
    %896 = vmatpush1.msra.mxu0 %v161
    %897 = vmatprep.subr.mxu0 0.0
    %898 = vmatpush1.msra.mxu0 %v162
    %899 = vmatprep.subr.mxu0 0.0
    %900 = vmatpush1.msra.mxu0 %v163
    %901 = vmatprep.subr.mxu0 0.0
    %902 = vmatpush1.msra.mxu0 %v164
    %903 = vmatprep.subr.mxu0 0.0
    %904 = vmatpush1.msra.mxu0 0.0
    %905 = vmatprep.subr.mxu0 0.0
    %906 = vmatpush1.msra.mxu0 0.0
    %907 = vmatprep.subr.mxu0 0.0
    %908 = vmatpush1.msra.mxu0 0.0
    %909 = vmatprep.subr.mxu0 0.0
    %910 = vmatpush1.msra.mxu0 0.0
    %911 = vmatprep.subr.mxu0 0.0
    %912 = vmatpush1.msra.mxu0 0.0
    %913 = vmatprep.subr.mxu0 0.0
    %914 = vmatpush1.msra.mxu0 0.0
    %915 = vmatprep.subr.mxu0 0.0
    %916 = vmatpush1.msra.mxu0 0.0
    %917 = vmatprep.subr.mxu0 0.0
    %918 = vmatpush1.msra.mxu0 0.0
    %919 = vmatprep.subr.mxu0 0.0
    %920 = vmatpush1.msra.mxu0 0.0
    %921 = vmatprep.subr.mxu0 0.0
    %922 = vmatpush1.msra.mxu0 0.0
    %923 = vmatprep.subr.mxu0 0.0
    %924 = vmatpush1.msra.mxu0 0.0
    %925 = vmatprep.subr.mxu0 0.0
    %926 = vmatpush1.msra.mxu0 0.0
    %927 = vmatprep.subr.mxu0 0.0
    %928 = vmatpush1.msra.mxu0 0.0
    %929 = vmatprep.subr.mxu0 0.0
    %930 = vmatpush1.msra.mxu0 0.0
    %931 = vmatprep.subr.mxu0 0.0
    %932 = vmatpush1.msra.mxu0 0.0
    %933 = vmatprep.subr.mxu0 0.0
    %934 = vmatpush1.msra.mxu0 0.0
    %935 = vmatprep.subr.mxu0 0.0
    %936 = vmatpush1.msra.mxu0 0.0
    %937 = vmatprep.subr.mxu0 0.0
    %938 = vmatpush1.msra.mxu0 0.0
    %939 = vmatprep.subr.mxu0 0.0
    %940 = vmatpush1.msra.mxu0 0.0
    %941 = vmatprep.subr.mxu0 0.0
    %942 = vmatpush1.msra.mxu0 0.0
    %943 = vmatprep.subr.mxu0 0.0
    %944 = vmatpush1.msra.mxu0 0.0
    %945 = vmatprep.subr.mxu0 0.0
    %946 = vmatpush1.msra.mxu0 0.0
    %947 = vmatprep.subr.mxu0 0.0
    %948 = vmatpush1.msra.mxu0 0.0
    %949 = vmatprep.subr.mxu0 0.0
    %950 = vmatpush1.msra.mxu0 0.0
    %951 = vmatprep.subr.mxu0 0.0
    %952 = vmatpush1.msra.mxu0 0.0
    %953 = vmatprep.subr.mxu0 0.0
    %954 = vmatpush1.msra.mxu0 0.0
    %955 = vmatprep.subr.mxu0 0.0
    %956 = vmatpush1.msra.mxu0 0.0
    %957 = vmatprep.subr.mxu0 0.0
    %958 = vmatpush1.msra.mxu0 0.0
    %959 = vmatprep.mubr.f32.mxu0 0.0
    %960 = vmatmul.mubr.f32.gmra.mrb[0].mxu0 %v893
    %v961 = vpop.f32.mrb[0].mxu0
    %v962 = vadd.f32 0.0, %v961
    %v963 = vpop.f32.mrb[0].mxu0
    %964 = vdwg.mxu0
    %v965 = vadd.f32 %v416, %v962
    %v966 = vxor.u32 %v965, 2147483648
    %v967 = vmul.f32 %v966, 1.442695
    %v968 = vpow.pop %v967
    %v969 = vadd.f32 %v968, 1.0
    %v970 = vrcp.pop %v969
    %v971 = vmul.f32 1.0, %v970
    %v972 = vtanh.pop %v965
    %v973 = vmul.f32 %v971, %v883
    %975 = vrot.lane.b32.xlu0 %v972, 64
    %v976 = vpop.permute.xlu0 %975
    %v978 = vmul.f32 %v971, %v976
    %980 = vrot.lane.b32.xlu0 %v978, 32
    %v981 = vpop.permute.xlu0 %980
    %v983 = vadd.f32 %v973, %v981
    %v984 = vtanh.pop %v983
    %986 = vrot.lane.b32.xlu0 %v984, 64
    %v987 = vpop.permute.xlu0 %986
    %v989 = vmul.f32 %v971, %v987
    %991 = vrot.lane.b32.xlu0 %v989, 32
    %v992 = vpop.permute.xlu0 %991
    %v993 = vsel %vm491, %v992, 0
    %995 = vmatprep.subr.mxu0 0.0
    %996 = vmatpush1.msra.mxu0 %v161
    %997 = vmatprep.subr.mxu0 0.0
    %998 = vmatpush1.msra.mxu0 %v162
    %999 = vmatprep.subr.mxu0 0.0
    %1000 = vmatpush1.msra.mxu0 %v163
    %1001 = vmatprep.subr.mxu0 0.0
    %1002 = vmatpush1.msra.mxu0 %v164
    %1003 = vmatprep.subr.mxu0 0.0
    %1004 = vmatpush1.msra.mxu0 0.0
    %1005 = vmatprep.subr.mxu0 0.0
    %1006 = vmatpush1.msra.mxu0 0.0
    %1007 = vmatprep.subr.mxu0 0.0
    %1008 = vmatpush1.msra.mxu0 0.0
    %1009 = vmatprep.subr.mxu0 0.0
    %1010 = vmatpush1.msra.mxu0 0.0
    %1011 = vmatprep.subr.mxu0 0.0
    %1012 = vmatpush1.msra.mxu0 0.0
    %1013 = vmatprep.subr.mxu0 0.0
    %1014 = vmatpush1.msra.mxu0 0.0
    %1015 = vmatprep.subr.mxu0 0.0
    %1016 = vmatpush1.msra.mxu0 0.0
    %1017 = vmatprep.subr.mxu0 0.0
    %1018 = vmatpush1.msra.mxu0 0.0
    %1019 = vmatprep.subr.mxu0 0.0
    %1020 = vmatpush1.msra.mxu0 0.0
    %1021 = vmatprep.subr.mxu0 0.0
    %1022 = vmatpush1.msra.mxu0 0.0
    %1023 = vmatprep.subr.mxu0 0.0
    %1024 = vmatpush1.msra.mxu0 0.0
    %1025 = vmatprep.subr.mxu0 0.0
    %1026 = vmatpush1.msra.mxu0 0.0
    %1027 = vmatprep.subr.mxu0 0.0
    %1028 = vmatpush1.msra.mxu0 0.0
    %1029 = vmatprep.subr.mxu0 0.0
    %1030 = vmatpush1.msra.mxu0 0.0
    %1031 = vmatprep.subr.mxu0 0.0
    %1032 = vmatpush1.msra.mxu0 0.0
    %1033 = vmatprep.subr.mxu0 0.0
    %1034 = vmatpush1.msra.mxu0 0.0
    %1035 = vmatprep.subr.mxu0 0.0
    %1036 = vmatpush1.msra.mxu0 0.0
    %1037 = vmatprep.subr.mxu0 0.0
    %1038 = vmatpush1.msra.mxu0 0.0
    %1039 = vmatprep.subr.mxu0 0.0
    %1040 = vmatpush1.msra.mxu0 0.0
    %1041 = vmatprep.subr.mxu0 0.0
    %1042 = vmatpush1.msra.mxu0 0.0
    %1043 = vmatprep.subr.mxu0 0.0
    %1044 = vmatpush1.msra.mxu0 0.0
    %1045 = vmatprep.subr.mxu0 0.0
    %1046 = vmatpush1.msra.mxu0 0.0
    %1047 = vmatprep.subr.mxu0 0.0
    %1048 = vmatpush1.msra.mxu0 0.0
    %1049 = vmatprep.subr.mxu0 0.0
    %1050 = vmatpush1.msra.mxu0 0.0
    %1051 = vmatprep.subr.mxu0 0.0
    %1052 = vmatpush1.msra.mxu0 0.0
    %1053 = vmatprep.subr.mxu0 0.0
    %1054 = vmatpush1.msra.mxu0 0.0
    %1055 = vmatprep.subr.mxu0 0.0
    %1056 = vmatpush1.msra.mxu0 0.0
    %1057 = vmatprep.subr.mxu0 0.0
    %1058 = vmatpush1.msra.mxu0 0.0
    %1059 = vmatprep.mubr.f32.mxu0 0.0
    %1060 = vmatmul.mubr.f32.gmra.mrb[0].mxu0 %v993
    %v1061 = vpop.f32.mrb[0].mxu0
    %v1062 = vadd.f32 0.0, %v1061
    %v1063 = vpop.f32.mrb[0].mxu0
    %1064 = vdwg.mxu0
    %v1065 = vadd.f32 %v418, %v1062
    %v1066 = vxor.u32 %v1065, 2147483648
    %v1067 = vmul.f32 %v1066, 1.442695
    %v1068 = vpow.pop %v1067
    %v1069 = vadd.f32 %v1068, 1.0
    %v1070 = vrcp.pop %v1069
    %v1071 = vmul.f32 1.0, %v1070
    %v1072 = vtanh.pop %v1065
    %v1073 = vmul.f32 %v1071, %v983
    %1075 = vrot.lane.b32.xlu0 %v1072, 64
    %v1076 = vpop.permute.xlu0 %1075
    %v1078 = vmul.f32 %v1071, %v1076
    %1080 = vrot.lane.b32.xlu0 %v1078, 32
    %v1081 = vpop.permute.xlu0 %1080
    %v1083 = vadd.f32 %v1073, %v1081
    %v1084 = vtanh.pop %v1083
    %1086 = vrot.lane.b32.xlu0 %v1084, 64
    %v1087 = vpop.permute.xlu0 %1086
    %v1089 = vmul.f32 %v1071, %v1087
    %1091 = vrot.lane.b32.xlu0 %v1089, 32
    %v1092 = vpop.permute.xlu0 %1091
    %v1093 = vsel %vm491, %v1092, 0
    %1095 = vmatprep.subr.mxu0 0.0
    %1096 = vmatpush1.msra.mxu0 %v161
    %1097 = vmatprep.subr.mxu0 0.0
    %1098 = vmatpush1.msra.mxu0 %v162
    %1099 = vmatprep.subr.mxu0 0.0
    %1100 = vmatpush1.msra.mxu0 %v163
    %1101 = vmatprep.subr.mxu0 0.0
    %1102 = vmatpush1.msra.mxu0 %v164
    %1103 = vmatprep.subr.mxu0 0.0
    %1104 = vmatpush1.msra.mxu0 0.0
    %1105 = vmatprep.subr.mxu0 0.0
    %1106 = vmatpush1.msra.mxu0 0.0
    %1107 = vmatprep.subr.mxu0 0.0
    %1108 = vmatpush1.msra.mxu0 0.0
    %1109 = vmatprep.subr.mxu0 0.0
    %1110 = vmatpush1.msra.mxu0 0.0
    %1111 = vmatprep.subr.mxu0 0.0
    %1112 = vmatpush1.msra.mxu0 0.0
    %1113 = vmatprep.subr.mxu0 0.0
    %1114 = vmatpush1.msra.mxu0 0.0
    %1115 = vmatprep.subr.mxu0 0.0
    %1116 = vmatpush1.msra.mxu0 0.0
    %1117 = vmatprep.subr.mxu0 0.0
    %1118 = vmatpush1.msra.mxu0 0.0
    %1119 = vmatprep.subr.mxu0 0.0
    %1120 = vmatpush1.msra.mxu0 0.0
    %1121 = vmatprep.subr.mxu0 0.0
    %1122 = vmatpush1.msra.mxu0 0.0
    %1123 = vmatprep.subr.mxu0 0.0
    %1124 = vmatpush1.msra.mxu0 0.0
    %1125 = vmatprep.subr.mxu0 0.0
    %1126 = vmatpush1.msra.mxu0 0.0
    %1127 = vmatprep.subr.mxu0 0.0
    %1128 = vmatpush1.msra.mxu0 0.0
    %1129 = vmatprep.subr.mxu0 0.0
    %1130 = vmatpush1.msra.mxu0 0.0
    %1131 = vmatprep.subr.mxu0 0.0
    %1132 = vmatpush1.msra.mxu0 0.0
    %1133 = vmatprep.subr.mxu0 0.0
    %1134 = vmatpush1.msra.mxu0 0.0
    %1135 = vmatprep.subr.mxu0 0.0
    %1136 = vmatpush1.msra.mxu0 0.0
    %1137 = vmatprep.subr.mxu0 0.0
    %1138 = vmatpush1.msra.mxu0 0.0
    %1139 = vmatprep.subr.mxu0 0.0
    %1140 = vmatpush1.msra.mxu0 0.0
    %1141 = vmatprep.subr.mxu0 0.0
    %1142 = vmatpush1.msra.mxu0 0.0
    %1143 = vmatprep.subr.mxu0 0.0
    %1144 = vmatpush1.msra.mxu0 0.0
    %1145 = vmatprep.subr.mxu0 0.0
    %1146 = vmatpush1.msra.mxu0 0.0
    %1147 = vmatprep.subr.mxu0 0.0
    %1148 = vmatpush1.msra.mxu0 0.0
    %1149 = vmatprep.subr.mxu0 0.0
    %1150 = vmatpush1.msra.mxu0 0.0
    %1151 = vmatprep.subr.mxu0 0.0
    %1152 = vmatpush1.msra.mxu0 0.0
    %1153 = vmatprep.subr.mxu0 0.0
    %1154 = vmatpush1.msra.mxu0 0.0
    %1155 = vmatprep.subr.mxu0 0.0
    %1156 = vmatpush1.msra.mxu0 0.0
    %1157 = vmatprep.subr.mxu0 0.0
    %1158 = vmatpush1.msra.mxu0 0.0
    %1159 = vmatprep.mubr.f32.mxu0 0.0
    %1160 = vmatmul.mubr.f32.gmra.mrb[0].mxu0 %v1093
    %v1161 = vpop.f32.mrb[0].mxu0
    %v1162 = vadd.f32 0.0, %v1161
    %v1163 = vpop.f32.mrb[0].mxu0
    %1164 = vdwg.mxu0
    %v1165 = vadd.f32 %v487, %v1162
    %v1166 = vxor.u32 %v1165, 2147483648
    %v1167 = vmul.f32 %v1166, 1.442695
    %v1168 = vpow.pop %v1167
    %v1169 = vadd.f32 %v1168, 1.0
    %v1170 = vrcp.pop %v1169
    %v1171 = vmul.f32 1.0, %v1170
    %v1172 = vtanh.pop %v1165
    %v1173 = vmul.f32 %v1171, %v1083
    %1175 = vrot.lane.b32.xlu0 %v1172, 64
    %v1176 = vpop.permute.xlu0 %1175
    %v1178 = vmul.f32 %v1171, %v1176
    %1180 = vrot.lane.b32.xlu0 %v1178, 32
    %v1181 = vpop.permute.xlu0 %1180
    %v1183 = vadd.f32 %v1173, %v1181
    %v1184 = vtanh.pop %v1183
    %1186 = vrot.lane.b32.xlu0 %v1184, 64
    %v1187 = vpop.permute.xlu0 %1186
    %v1189 = vmul.f32 %v1171, %v1187
    %1191 = vrot.lane.b32.xlu0 %v1189, 32
    %v1192 = vpop.permute.xlu0 %1191
    %v1193 = vsel %vm491, %v1192, 0
    %1195 = vmatprep.subr.mxu0 0.0
    %1196 = vmatpush1.msra.mxu0 %v161
    %1197 = vmatprep.subr.mxu0 0.0
    %1198 = vmatpush1.msra.mxu0 %v162
    %1199 = vmatprep.subr.mxu0 0.0
    %1200 = vmatpush1.msra.mxu0 %v163
    %1201 = vmatprep.subr.mxu0 0.0
    %1202 = vmatpush1.msra.mxu0 %v164
    %1203 = vmatprep.subr.mxu0 0.0
    %1204 = vmatpush1.msra.mxu0 0.0
    %1205 = vmatprep.subr.mxu0 0.0
    %1206 = vmatpush1.msra.mxu0 0.0
    %1207 = vmatprep.subr.mxu0 0.0
    %1208 = vmatpush1.msra.mxu0 0.0
    %1209 = vmatprep.subr.mxu0 0.0
    %1210 = vmatpush1.msra.mxu0 0.0
    %1211 = vmatprep.subr.mxu0 0.0
    %1212 = vmatpush1.msra.mxu0 0.0
    %1213 = vmatprep.subr.mxu0 0.0
    %1214 = vmatpush1.msra.mxu0 0.0
    %1215 = vmatprep.subr.mxu0 0.0
    %1216 = vmatpush1.msra.mxu0 0.0
    %1217 = vmatprep.subr.mxu0 0.0
    %1218 = vmatpush1.msra.mxu0 0.0
    %1219 = vmatprep.subr.mxu0 0.0
    %1220 = vmatpush1.msra.mxu0 0.0
    %1221 = vmatprep.subr.mxu0 0.0
    %1222 = vmatpush1.msra.mxu0 0.0
    %1223 = vmatprep.subr.mxu0 0.0
    %1224 = vmatpush1.msra.mxu0 0.0
    %1225 = vmatprep.subr.mxu0 0.0
    %1226 = vmatpush1.msra.mxu0 0.0
    %1227 = vmatprep.subr.mxu0 0.0
    %1228 = vmatpush1.msra.mxu0 0.0
    %1229 = vmatprep.subr.mxu0 0.0
    %1230 = vmatpush1.msra.mxu0 0.0
    %1231 = vmatprep.subr.mxu0 0.0
    %1232 = vmatpush1.msra.mxu0 0.0
    %1233 = vmatprep.subr.mxu0 0.0
    %1234 = vmatpush1.msra.mxu0 0.0
    %1235 = vmatprep.subr.mxu0 0.0
    %1236 = vmatpush1.msra.mxu0 0.0
    %1237 = vmatprep.subr.mxu0 0.0
    %1238 = vmatpush1.msra.mxu0 0.0
    %1239 = vmatprep.subr.mxu0 0.0
    %1240 = vmatpush1.msra.mxu0 0.0
    %1241 = vmatprep.subr.mxu0 0.0
    %1242 = vmatpush1.msra.mxu0 0.0
    %1243 = vmatprep.subr.mxu0 0.0
    %1244 = vmatpush1.msra.mxu0 0.0
    %1245 = vmatprep.subr.mxu0 0.0
    %1246 = vmatpush1.msra.mxu0 0.0
    %1247 = vmatprep.subr.mxu0 0.0
    %1248 = vmatpush1.msra.mxu0 0.0
    %1249 = vmatprep.subr.mxu0 0.0
    %1250 = vmatpush1.msra.mxu0 0.0
    %1251 = vmatprep.subr.mxu0 0.0
    %1252 = vmatpush1.msra.mxu0 0.0
    %1253 = vmatprep.subr.mxu0 0.0
    %1254 = vmatpush1.msra.mxu0 0.0
    %1255 = vmatprep.subr.mxu0 0.0
    %1256 = vmatpush1.msra.mxu0 0.0
    %1257 = vmatprep.subr.mxu0 0.0
    %1258 = vmatpush1.msra.mxu0 0.0
    %1259 = vmatprep.mubr.f32.mxu0 0.0
    %1260 = vmatmul.mubr.f32.gmra.mrb[0].mxu0 %v1193
    %v1261 = vpop.f32.mrb[0].mxu0
    %v1262 = vadd.f32 0.0, %v1261
    %v1263 = vpop.f32.mrb[0].mxu0
    %1264 = vdwg.mxu0
    %v1265 = vadd.f32 %v489, %v1262
    %v1266 = vxor.u32 %v1265, 2147483648
    %v1267 = vmul.f32 %v1266, 1.442695
    %v1268 = vpow.pop %v1267
    %v1269 = vadd.f32 %v1268, 1.0
    %v1270 = vrcp.pop %v1269
    %v1271 = vmul.f32 1.0, %v1270
    %v1272 = vtanh.pop %v1265
    %v1273 = vmul.f32 %v1271, %v1183
    %1275 = vrot.lane.b32.xlu0 %v1272, 64
    %v1276 = vpop.permute.xlu0 %1275
    %v1278 = vmul.f32 %v1271, %v1276
    %1280 = vrot.lane.b32.xlu0 %v1278, 32
    %v1281 = vpop.permute.xlu0 %1280
    %v1283 = vadd.f32 %v1273, %v1281
    %v1284 = vtanh.pop %v1283
    %1286 = vrot.lane.b32.xlu0 %v1284, 64
    %v1287 = vpop.permute.xlu0 %1286
    %v1289 = vmul.f32 %v1271, %v1287
    %v1290 = vld [vmem:[%s2] sm:$0xff]
    %v1291 = vld [vmem:[%s2 + $0x8] sm:$0xff]
    %v1292 = vld [vmem:[%s2 + $0x10] sm:$0xff]
    %v1293 = vld [vmem:[%s2 + $0x18] sm:$0xff]
    %v1294 = vld [vmem:[%s2 + $0x20] sm:$0xff]
    %v1295 = vlaneseq
    %v1296 = vshrl.u32 %v1295, 7
    %v1297 = vsub.s32 0, %v1296
    %v1298 = vrot.slane %v1294, %v1297
    %1300 = vrot.lane.b32.xlu0 %v1289, 32
    %v1301 = vpop.permute.xlu0 %1300
    %v1302 = vsel %vm491, %v1301, 0
    %1304 = vmatprep.subr.mxu0 0.0
    %1305 = vmatpush1.msra.mxu0 %v1290
    %1306 = vmatprep.subr.mxu0 0.0
    %1307 = vmatpush1.msra.mxu0 %v1291
    %1308 = vmatprep.subr.mxu0 0.0
    %1309 = vmatpush1.msra.mxu0 %v1292
    %1310 = vmatprep.subr.mxu0 0.0
    %1311 = vmatpush1.msra.mxu0 %v1293
    %1312 = vmatprep.subr.mxu0 0.0
    %1313 = vmatpush1.msra.mxu0 0.0
    %1314 = vmatprep.subr.mxu0 0.0
    %1315 = vmatpush1.msra.mxu0 0.0
    %1316 = vmatprep.subr.mxu0 0.0
    %1317 = vmatpush1.msra.mxu0 0.0
    %1318 = vmatprep.subr.mxu0 0.0
    %1319 = vmatpush1.msra.mxu0 0.0
    %1320 = vmatprep.subr.mxu0 0.0
    %1321 = vmatpush1.msra.mxu0 0.0
    %1322 = vmatprep.subr.mxu0 0.0
    %1323 = vmatpush1.msra.mxu0 0.0
    %1324 = vmatprep.subr.mxu0 0.0
    %1325 = vmatpush1.msra.mxu0 0.0
    %1326 = vmatprep.subr.mxu0 0.0
    %1327 = vmatpush1.msra.mxu0 0.0
    %1328 = vmatprep.subr.mxu0 0.0
    %1329 = vmatpush1.msra.mxu0 0.0
    %1330 = vmatprep.subr.mxu0 0.0
    %1331 = vmatpush1.msra.mxu0 0.0
    %1332 = vmatprep.subr.mxu0 0.0
    %1333 = vmatpush1.msra.mxu0 0.0
    %1334 = vmatprep.subr.mxu0 0.0
    %1335 = vmatpush1.msra.mxu0 0.0
    %1336 = vmatprep.subr.mxu0 0.0
    %1337 = vmatpush1.msra.mxu0 0.0
    %1338 = vmatprep.subr.mxu0 0.0
    %1339 = vmatpush1.msra.mxu0 0.0
    %1340 = vmatprep.subr.mxu0 0.0
    %1341 = vmatpush1.msra.mxu0 0.0
    %1342 = vmatprep.subr.mxu0 0.0
    %1343 = vmatpush1.msra.mxu0 0.0
    %1344 = vmatprep.subr.mxu0 0.0
    %1345 = vmatpush1.msra.mxu0 0.0
    %1346 = vmatprep.subr.mxu0 0.0
    %1347 = vmatpush1.msra.mxu0 0.0
    %1348 = vmatprep.subr.mxu0 0.0
    %1349 = vmatpush1.msra.mxu0 0.0
    %1350 = vmatprep.subr.mxu0 0.0
    %1351 = vmatpush1.msra.mxu0 0.0
    %1352 = vmatprep.subr.mxu0 0.0
    %1353 = vmatpush1.msra.mxu0 0.0
    %1354 = vmatprep.subr.mxu0 0.0
    %1355 = vmatpush1.msra.mxu0 0.0
    %1356 = vmatprep.subr.mxu0 0.0
    %1357 = vmatpush1.msra.mxu0 0.0
    %1358 = vmatprep.subr.mxu0 0.0
    %1359 = vmatpush1.msra.mxu0 0.0
    %1360 = vmatprep.subr.mxu0 0.0
    %1361 = vmatpush1.msra.mxu0 0.0
    %1362 = vmatprep.subr.mxu0 0.0
    %1363 = vmatpush1.msra.mxu0 0.0
    %1364 = vmatprep.subr.mxu0 0.0
    %1365 = vmatpush1.msra.mxu0 0.0
    %1366 = vmatprep.subr.mxu0 0.0
    %1367 = vmatpush1.msra.mxu0 0.0
    %1368 = vmatprep.mubr.f32.mxu0 0.0
    %1369 = vmatmul.mubr.f32.gmra.mrb[0].mxu0 %v1302
    %v1370 = vpop.f32.mrb[0].mxu0
    %v1371 = vadd.f32 %v1298, %v1370
    %v1372 = vpop.f32.mrb[0].mxu0
    %1373 = vdwg.mxu0
    %vm1374 = vcmp.ge.f32.partialorder %v1371, 0.0
    %v1375 = vmul.f32 %v1371, 0.01
    %v1376 = vsel %vm1374, %v1371, %v1375
    %s1377 = scalar_lea.vmem %s2, 40
    %v1378 = vld [vmem:[%s1377] sm:$0xff]
    %v1379 = vld [vmem:[%s1377 + $0x8] sm:$0xff]
    %v1380 = vld [vmem:[%s1377 + $0x10] sm:$0xff]
    %v1381 = vld [vmem:[%s1377 + $0x18] sm:$0xff]
    %v1382 = vld [vmem:[%s1377 + $0x20] sm:$0xff]
    %v1383 = vlaneseq
    %v1384 = vshrl.u32 %v1383, 7
    %v1385 = vsub.s32 0, %v1384
    %v1386 = vrot.slane %v1382, %v1385
    %v1388 = vsel %vm491, %v1376, 0
    %1390 = vmatprep.subr.mxu0 0.0
    %1391 = vmatpush1.msra.mxu0 %v1378
    %1392 = vmatprep.subr.mxu0 0.0
    %1393 = vmatpush1.msra.mxu0 %v1379
    %1394 = vmatprep.subr.mxu0 0.0
    %1395 = vmatpush1.msra.mxu0 %v1380
    %1396 = vmatprep.subr.mxu0 0.0
    %1397 = vmatpush1.msra.mxu0 %v1381
    %1398 = vmatprep.subr.mxu0 0.0
    %1399 = vmatpush1.msra.mxu0 0.0
    %1400 = vmatprep.subr.mxu0 0.0
    %1401 = vmatpush1.msra.mxu0 0.0
    %1402 = vmatprep.subr.mxu0 0.0
    %1403 = vmatpush1.msra.mxu0 0.0
    %1404 = vmatprep.subr.mxu0 0.0
    %1405 = vmatpush1.msra.mxu0 0.0
    %1406 = vmatprep.subr.mxu0 0.0
    %1407 = vmatpush1.msra.mxu0 0.0
    %1408 = vmatprep.subr.mxu0 0.0
    %1409 = vmatpush1.msra.mxu0 0.0
    %1410 = vmatprep.subr.mxu0 0.0
    %1411 = vmatpush1.msra.mxu0 0.0
    %1412 = vmatprep.subr.mxu0 0.0
    %1413 = vmatpush1.msra.mxu0 0.0
    %1414 = vmatprep.subr.mxu0 0.0
    %1415 = vmatpush1.msra.mxu0 0.0
    %1416 = vmatprep.subr.mxu0 0.0
    %1417 = vmatpush1.msra.mxu0 0.0
    %1418 = vmatprep.subr.mxu0 0.0
    %1419 = vmatpush1.msra.mxu0 0.0
    %1420 = vmatprep.subr.mxu0 0.0
    %1421 = vmatpush1.msra.mxu0 0.0
    %1422 = vmatprep.subr.mxu0 0.0
    %1423 = vmatpush1.msra.mxu0 0.0
    %1424 = vmatprep.subr.mxu0 0.0
    %1425 = vmatpush1.msra.mxu0 0.0
    %1426 = vmatprep.subr.mxu0 0.0
    %1427 = vmatpush1.msra.mxu0 0.0
    %1428 = vmatprep.subr.mxu0 0.0
    %1429 = vmatpush1.msra.mxu0 0.0
    %1430 = vmatprep.subr.mxu0 0.0
    %1431 = vmatpush1.msra.mxu0 0.0
    %1432 = vmatprep.subr.mxu0 0.0
    %1433 = vmatpush1.msra.mxu0 0.0
    %1434 = vmatprep.subr.mxu0 0.0
    %1435 = vmatpush1.msra.mxu0 0.0
    %1436 = vmatprep.subr.mxu0 0.0
    %1437 = vmatpush1.msra.mxu0 0.0
    %1438 = vmatprep.subr.mxu0 0.0
    %1439 = vmatpush1.msra.mxu0 0.0
    %1440 = vmatprep.subr.mxu0 0.0
    %1441 = vmatpush1.msra.mxu0 0.0
    %1442 = vmatprep.subr.mxu0 0.0
    %1443 = vmatpush1.msra.mxu0 0.0
    %1444 = vmatprep.subr.mxu0 0.0
    %1445 = vmatpush1.msra.mxu0 0.0
    %1446 = vmatprep.subr.mxu0 0.0
    %1447 = vmatpush1.msra.mxu0 0.0
    %1448 = vmatprep.subr.mxu0 0.0
    %1449 = vmatpush1.msra.mxu0 0.0
    %1450 = vmatprep.subr.mxu0 0.0
    %1451 = vmatpush1.msra.mxu0 0.0
    %1452 = vmatprep.subr.mxu0 0.0
    %1453 = vmatpush1.msra.mxu0 0.0
    %1454 = vmatprep.mubr.f32.mxu0 0.0
    %1455 = vmatmul.mubr.f32.gmra.mrb[0].mxu0 %v1388
    %v1456 = vpop.f32.mrb[0].mxu0
    %v1457 = vadd.f32 %v1386, %v1456
    %v1458 = vpop.f32.mrb[0].mxu0
    %1459 = vdwg.mxu0
    %vm1460 = vcmp.ge.f32.partialorder %v1457, 0.0
    %v1461 = vmul.f32 %v1457, 0.01
    %v1462 = vsel %vm1460, %v1457, %v1461
    %s1463 = scalar_lea.vmem %s2, 80
    %v1464 = vld [vmem:[%s1463] sm:$0xff]
    %v1465 = vld [vmem:[%s1463 + $0x8] sm:$0xff]
    %v1466 = vld [vmem:[%s1463 + $0x10] sm:$0xff]
    %v1467 = vld [vmem:[%s1463 + $0x18] sm:$0xff]
    %v1468 = vld [vmem:[%s1463 + $0x20] sm:$0xff]
    %v1469 = vlaneseq
    %v1470 = vshrl.u32 %v1469, 7
    %v1471 = vsub.s32 0, %v1470
    %v1472 = vrot.slane %v1468, %v1471
    %v1474 = vsel %vm491, %v1462, 0
    %1476 = vmatprep.subr.mxu0 0.0
    %1477 = vmatpush1.msra.mxu0 %v1464
    %1478 = vmatprep.subr.mxu0 0.0
    %1479 = vmatpush1.msra.mxu0 %v1465
    %1480 = vmatprep.subr.mxu0 0.0
    %1481 = vmatpush1.msra.mxu0 %v1466
    %1482 = vmatprep.subr.mxu0 0.0
    %1483 = vmatpush1.msra.mxu0 %v1467
    %1484 = vmatprep.subr.mxu0 0.0
    %1485 = vmatpush1.msra.mxu0 0.0
    %1486 = vmatprep.subr.mxu0 0.0
    %1487 = vmatpush1.msra.mxu0 0.0
    %1488 = vmatprep.subr.mxu0 0.0
    %1489 = vmatpush1.msra.mxu0 0.0
    %1490 = vmatprep.subr.mxu0 0.0
    %1491 = vmatpush1.msra.mxu0 0.0
    %1492 = vmatprep.subr.mxu0 0.0
    %1493 = vmatpush1.msra.mxu0 0.0
    %1494 = vmatprep.subr.mxu0 0.0
    %1495 = vmatpush1.msra.mxu0 0.0
    %1496 = vmatprep.subr.mxu0 0.0
    %1497 = vmatpush1.msra.mxu0 0.0
    %1498 = vmatprep.subr.mxu0 0.0
    %1499 = vmatpush1.msra.mxu0 0.0
    %1500 = vmatprep.subr.mxu0 0.0
    %1501 = vmatpush1.msra.mxu0 0.0
    %1502 = vmatprep.subr.mxu0 0.0
    %1503 = vmatpush1.msra.mxu0 0.0
    %1504 = vmatprep.subr.mxu0 0.0
    %1505 = vmatpush1.msra.mxu0 0.0
    %1506 = vmatprep.subr.mxu0 0.0
    %1507 = vmatpush1.msra.mxu0 0.0
    %1508 = vmatprep.subr.mxu0 0.0
    %1509 = vmatpush1.msra.mxu0 0.0
    %1510 = vmatprep.subr.mxu0 0.0
    %1511 = vmatpush1.msra.mxu0 0.0
    %1512 = vmatprep.subr.mxu0 0.0
    %1513 = vmatpush1.msra.mxu0 0.0
    %1514 = vmatprep.subr.mxu0 0.0
    %1515 = vmatpush1.msra.mxu0 0.0
    %1516 = vmatprep.subr.mxu0 0.0
    %1517 = vmatpush1.msra.mxu0 0.0
    %1518 = vmatprep.subr.mxu0 0.0
    %1519 = vmatpush1.msra.mxu0 0.0
    %1520 = vmatprep.subr.mxu0 0.0
    %1521 = vmatpush1.msra.mxu0 0.0
    %1522 = vmatprep.subr.mxu0 0.0
    %1523 = vmatpush1.msra.mxu0 0.0
    %1524 = vmatprep.subr.mxu0 0.0
    %1525 = vmatpush1.msra.mxu0 0.0
    %1526 = vmatprep.subr.mxu0 0.0
    %1527 = vmatpush1.msra.mxu0 0.0
    %1528 = vmatprep.subr.mxu0 0.0
    %1529 = vmatpush1.msra.mxu0 0.0
    %1530 = vmatprep.subr.mxu0 0.0
    %1531 = vmatpush1.msra.mxu0 0.0
    %1532 = vmatprep.subr.mxu0 0.0
    %1533 = vmatpush1.msra.mxu0 0.0
    %1534 = vmatprep.subr.mxu0 0.0
    %1535 = vmatpush1.msra.mxu0 0.0
    %1536 = vmatprep.subr.mxu0 0.0
    %1537 = vmatpush1.msra.mxu0 0.0
    %1538 = vmatprep.subr.mxu0 0.0
    %1539 = vmatpush1.msra.mxu0 0.0
    %1540 = vmatprep.mubr.f32.mxu0 0.0
    %1541 = vmatmul.mubr.f32.gmra.mrb[0].mxu0 %v1474
    %v1542 = vpop.f32.mrb[0].mxu0
    %v1543 = vadd.f32 %v1472, %v1542
    %v1544 = vpop.f32.mrb[0].mxu0
    %1545 = vdwg.mxu0
    %vm1546 = vcmp.ge.f32.partialorder %v1543, 0.0
    %v1547 = vmul.f32 %v1543, 0.01
    %v1548 = vsel %vm1546, %v1543, %v1547
    %s1549 = scalar_lea.vmem %s2, 120
    %v1550 = vld [vmem:[%s1549] sm:$0xff]
    %v1551 = vld [vmem:[%s1549 + $0x8] sm:$0xff]
    %v1552 = vld [vmem:[%s1549 + $0x10] sm:$0xff]
    %v1553 = vld [vmem:[%s1549 + $0x18] sm:$0xff]
    %v1554 = vld [vmem:[%s1549 + $0x20] sm:$0xff]
    %v1555 = vlaneseq
    %v1556 = vshrl.u32 %v1555, 7
    %v1557 = vsub.s32 0, %v1556
    %v1558 = vrot.slane %v1554, %v1557
    %v1560 = vsel %vm491, %v1548, 0
    %1562 = vmatprep.subr.mxu0 0.0
    %1563 = vmatpush1.msra.mxu0 %v1550
    %1564 = vmatprep.subr.mxu0 0.0
    %1565 = vmatpush1.msra.mxu0 %v1551
    %1566 = vmatprep.subr.mxu0 0.0
    %1567 = vmatpush1.msra.mxu0 %v1552
    %1568 = vmatprep.subr.mxu0 0.0
    %1569 = vmatpush1.msra.mxu0 %v1553
    %1570 = vmatprep.subr.mxu0 0.0
    %1571 = vmatpush1.msra.mxu0 0.0
    %1572 = vmatprep.subr.mxu0 0.0
    %1573 = vmatpush1.msra.mxu0 0.0
    %1574 = vmatprep.subr.mxu0 0.0
    %1575 = vmatpush1.msra.mxu0 0.0
    %1576 = vmatprep.subr.mxu0 0.0
    %1577 = vmatpush1.msra.mxu0 0.0
    %1578 = vmatprep.subr.mxu0 0.0
    %1579 = vmatpush1.msra.mxu0 0.0
    %1580 = vmatprep.subr.mxu0 0.0
    %1581 = vmatpush1.msra.mxu0 0.0
    %1582 = vmatprep.subr.mxu0 0.0
    %1583 = vmatpush1.msra.mxu0 0.0
    %1584 = vmatprep.subr.mxu0 0.0
    %1585 = vmatpush1.msra.mxu0 0.0
    %1586 = vmatprep.subr.mxu0 0.0
    %1587 = vmatpush1.msra.mxu0 0.0
    %1588 = vmatprep.subr.mxu0 0.0
    %1589 = vmatpush1.msra.mxu0 0.0
    %1590 = vmatprep.subr.mxu0 0.0
    %1591 = vmatpush1.msra.mxu0 0.0
    %1592 = vmatprep.subr.mxu0 0.0
    %1593 = vmatpush1.msra.mxu0 0.0
    %1594 = vmatprep.subr.mxu0 0.0
    %1595 = vmatpush1.msra.mxu0 0.0
    %1596 = vmatprep.subr.mxu0 0.0
    %1597 = vmatpush1.msra.mxu0 0.0
    %1598 = vmatprep.subr.mxu0 0.0
    %1599 = vmatpush1.msra.mxu0 0.0
    %1600 = vmatprep.subr.mxu0 0.0
    %1601 = vmatpush1.msra.mxu0 0.0
    %1602 = vmatprep.subr.mxu0 0.0
    %1603 = vmatpush1.msra.mxu0 0.0
    %1604 = vmatprep.subr.mxu0 0.0
    %1605 = vmatpush1.msra.mxu0 0.0
    %1606 = vmatprep.subr.mxu0 0.0
    %1607 = vmatpush1.msra.mxu0 0.0
    %1608 = vmatprep.subr.mxu0 0.0
    %1609 = vmatpush1.msra.mxu0 0.0
    %1610 = vmatprep.subr.mxu0 0.0
    %1611 = vmatpush1.msra.mxu0 0.0
    %1612 = vmatprep.subr.mxu0 0.0
    %1613 = vmatpush1.msra.mxu0 0.0
    %1614 = vmatprep.subr.mxu0 0.0
    %1615 = vmatpush1.msra.mxu0 0.0
    %1616 = vmatprep.subr.mxu0 0.0
    %1617 = vmatpush1.msra.mxu0 0.0
    %1618 = vmatprep.subr.mxu0 0.0
    %1619 = vmatpush1.msra.mxu0 0.0
    %1620 = vmatprep.subr.mxu0 0.0
    %1621 = vmatpush1.msra.mxu0 0.0
    %1622 = vmatprep.subr.mxu0 0.0
    %1623 = vmatpush1.msra.mxu0 0.0
    %1624 = vmatprep.subr.mxu0 0.0
    %1625 = vmatpush1.msra.mxu0 0.0
    %1626 = vmatprep.mubr.f32.mxu0 0.0
    %1627 = vmatmul.mubr.f32.gmra.mrb[0].mxu0 %v1560
    %v1628 = vpop.f32.mrb[0].mxu0
    %v1629 = vadd.f32 %v1558, %v1628
    %v1630 = vpop.f32.mrb[0].mxu0
    %1631 = vdwg.mxu0
    %vm1632 = vcmp.ge.f32.partialorder %v1629, 0.0
    %v1633 = vmul.f32 %v1629, 0.01
    %v1634 = vsel %vm1632, %v1629, %v1633
    %s1635 = scalar_lea.vmem %s2, 160
    %v1636 = vld [vmem:[%s1635] sm:$0xff]
    %v1637 = vld [vmem:[%s1635 + $0x8] sm:$0xff]
    %v1638 = vld [vmem:[%s1635 + $0x10] sm:$0xff]
    %v1639 = vld [vmem:[%s1635 + $0x18] sm:$0xff]
    %v1640 = vld [vmem:[%s1635 + $0x20] sm:$0xff]
    %v1641 = vlaneseq
    %v1642 = vshrl.u32 %v1641, 7
    %v1643 = vsub.s32 0, %v1642
    %v1644 = vrot.slane %v1640, %v1643
    %v1646 = vsel %vm491, %v1634, 0
    %1648 = vmatprep.subr.mxu0 0.0
    %1649 = vmatpush1.msra.mxu0 %v1636
    %1650 = vmatprep.subr.mxu0 0.0
    %1651 = vmatpush1.msra.mxu0 %v1637
    %1652 = vmatprep.subr.mxu0 0.0
    %1653 = vmatpush1.msra.mxu0 %v1638
    %1654 = vmatprep.subr.mxu0 0.0
    %1655 = vmatpush1.msra.mxu0 %v1639
    %1656 = vmatprep.subr.mxu0 0.0
    %1657 = vmatpush1.msra.mxu0 0.0
    %1658 = vmatprep.subr.mxu0 0.0
    %1659 = vmatpush1.msra.mxu0 0.0
    %1660 = vmatprep.subr.mxu0 0.0
    %1661 = vmatpush1.msra.mxu0 0.0
    %1662 = vmatprep.subr.mxu0 0.0
    %1663 = vmatpush1.msra.mxu0 0.0
    %1664 = vmatprep.subr.mxu0 0.0
    %1665 = vmatpush1.msra.mxu0 0.0
    %1666 = vmatprep.subr.mxu0 0.0
    %1667 = vmatpush1.msra.mxu0 0.0
    %1668 = vmatprep.subr.mxu0 0.0
    %1669 = vmatpush1.msra.mxu0 0.0
    %1670 = vmatprep.subr.mxu0 0.0
    %1671 = vmatpush1.msra.mxu0 0.0
    %1672 = vmatprep.subr.mxu0 0.0
    %1673 = vmatpush1.msra.mxu0 0.0
    %1674 = vmatprep.subr.mxu0 0.0
    %1675 = vmatpush1.msra.mxu0 0.0
    %1676 = vmatprep.subr.mxu0 0.0
    %1677 = vmatpush1.msra.mxu0 0.0
    %1678 = vmatprep.subr.mxu0 0.0
    %1679 = vmatpush1.msra.mxu0 0.0
    %1680 = vmatprep.subr.mxu0 0.0
    %1681 = vmatpush1.msra.mxu0 0.0
    %1682 = vmatprep.subr.mxu0 0.0
    %1683 = vmatpush1.msra.mxu0 0.0
    %1684 = vmatprep.subr.mxu0 0.0
    %1685 = vmatpush1.msra.mxu0 0.0
    %1686 = vmatprep.subr.mxu0 0.0
    %1687 = vmatpush1.msra.mxu0 0.0
    %1688 = vmatprep.subr.mxu0 0.0
    %1689 = vmatpush1.msra.mxu0 0.0
    %1690 = vmatprep.subr.mxu0 0.0
    %1691 = vmatpush1.msra.mxu0 0.0
    %1692 = vmatprep.subr.mxu0 0.0
    %1693 = vmatpush1.msra.mxu0 0.0
    %1694 = vmatprep.subr.mxu0 0.0
    %1695 = vmatpush1.msra.mxu0 0.0
    %1696 = vmatprep.subr.mxu0 0.0
    %1697 = vmatpush1.msra.mxu0 0.0
    %1698 = vmatprep.subr.mxu0 0.0
    %1699 = vmatpush1.msra.mxu0 0.0
    %1700 = vmatprep.subr.mxu0 0.0
    %1701 = vmatpush1.msra.mxu0 0.0
    %1702 = vmatprep.subr.mxu0 0.0
    %1703 = vmatpush1.msra.mxu0 0.0
    %1704 = vmatprep.subr.mxu0 0.0
    %1705 = vmatpush1.msra.mxu0 0.0
    %1706 = vmatprep.subr.mxu0 0.0
    %1707 = vmatpush1.msra.mxu0 0.0
    %1708 = vmatprep.subr.mxu0 0.0
    %1709 = vmatpush1.msra.mxu0 0.0
    %1710 = vmatprep.subr.mxu0 0.0
    %1711 = vmatpush1.msra.mxu0 0.0
    %1712 = vmatprep.mubr.f32.mxu0 0.0
    %1713 = vmatmul.mubr.f32.gmra.mrb[0].mxu0 %v1646
    %v1714 = vpop.f32.mrb[0].mxu0
    %v1715 = vadd.f32 %v1644, %v1714
    %v1716 = vpop.f32.mrb[0].mxu0
    %1717 = vdwg.mxu0
    %v1718 = vlaneseq
    %v1719 = vshrl.u32 %v1718, 7
    %vm1720 = vcmp.lt.s32.totalorder %v1719, 6
    %v1721 = vsel %vm1720, %v1715, -1e+30
    %vm1722 = vcmask 7168
    %v1723 = vsel %vm1722, %v1721, -inf
    %v1724 = vrot.slane %v1723, 4
    %v1725 = vmax.f32 %v1723, %v1724
    %v1726 = vrot.slane %v1725, 2
    %v1727 = vmax.f32 %v1725, %v1726
    %v1728 = vrot.slane %v1727, 1
    %v1729 = vmax.f32 %v1727, %v1728
    %v1730 = vsub.f32 %v1721, %v1729
    %v1731 = vmul.f32 %v1730, 1.442695
    %v1732 = vpow.pop %v1731
    %v1733 = vlaneseq
    %v1734 = vand.u32 %v1733, 127
    %v1735 = vmul.u32 %v1719, 3
    %vm1736 = vcmp.ge.s32.totalorder %v1734, %v1735
    %v1737 = vadd.s32 %v1719, 1
    %v1738 = vmul.u32 %v1737, 3
    %vm1739 = vcmp.lt.s32.totalorder %v1734, %v1738
    %vm1740 = vmand %vm1736, %vm1739
    %v1741 = vsel %vm1740, 1, 0
    %v1742 = vcvt.s32.f32 %v1741
    %vm1743 = vcmp.eq.s32.totalorder %v1734, 3
    %v1744 = vsub.s32 %v1719, %v1734
    %vm1745 = vcmp.eq.s32.totalorder %v1744, 0
    %vm1746 = vmor %vm1743, %vm1745
    %vm1747 = vcmp.eq.s32.totalorder %v1744, 3
    %vm1748 = vmor %vm1746, %vm1747
    %v1749 = vsel %vm1748, 1, 0
    %v1750 = vcvt.s32.f32 %v1749
    %1752 = vset.pattern.permute.xlu0 0
    %1753 = vperm.xlu0 %1752, %v1732
    %v1754 = vpop.permute.xlu0 %1753
    %v1756 = vmul.f32 %v1754, %v1750
    %vm1757 = vcmask 64512
    %v1759 = vsel %vm1757, %v1742, 0
    %1761 = vmatprep.subr.mxu0 0.0
    %1762 = vmatpush1.msra.mxu0 %v1756
    %1763 = vmatprep.subr.mxu0 0.0
    %1764 = vmatpush1.msra.mxu0 0.0
    %1765 = vmatprep.subr.mxu0 0.0
    %1766 = vmatpush1.msra.mxu0 0.0
    %1767 = vmatprep.subr.mxu0 0.0
    %1768 = vmatpush1.msra.mxu0 0.0
    %1769 = vmatprep.subr.mxu0 0.0
    %1770 = vmatpush1.msra.mxu0 0.0
    %1771 = vmatprep.subr.mxu0 0.0
    %1772 = vmatpush1.msra.mxu0 0.0
    %1773 = vmatprep.subr.mxu0 0.0
    %1774 = vmatpush1.msra.mxu0 0.0
    %1775 = vmatprep.subr.mxu0 0.0
    %1776 = vmatpush1.msra.mxu0 0.0
    %1777 = vmatprep.subr.mxu0 0.0
    %1778 = vmatpush1.msra.mxu0 0.0
    %1779 = vmatprep.subr.mxu0 0.0
    %1780 = vmatpush1.msra.mxu0 0.0
    %1781 = vmatprep.subr.mxu0 0.0
    %1782 = vmatpush1.msra.mxu0 0.0
    %1783 = vmatprep.subr.mxu0 0.0
    %1784 = vmatpush1.msra.mxu0 0.0
    %1785 = vmatprep.subr.mxu0 0.0
    %1786 = vmatpush1.msra.mxu0 0.0
    %1787 = vmatprep.subr.mxu0 0.0
    %1788 = vmatpush1.msra.mxu0 0.0
    %1789 = vmatprep.subr.mxu0 0.0
    %1790 = vmatpush1.msra.mxu0 0.0
    %1791 = vmatprep.subr.mxu0 0.0
    %1792 = vmatpush1.msra.mxu0 0.0
    %1793 = vmatprep.subr.mxu0 0.0
    %1794 = vmatpush1.msra.mxu0 0.0
    %1795 = vmatprep.subr.mxu0 0.0
    %1796 = vmatpush1.msra.mxu0 0.0
    %1797 = vmatprep.subr.mxu0 0.0
    %1798 = vmatpush1.msra.mxu0 0.0
    %1799 = vmatprep.subr.mxu0 0.0
    %1800 = vmatpush1.msra.mxu0 0.0
    %1801 = vmatprep.subr.mxu0 0.0
    %1802 = vmatpush1.msra.mxu0 0.0
    %1803 = vmatprep.subr.mxu0 0.0
    %1804 = vmatpush1.msra.mxu0 0.0
    %1805 = vmatprep.subr.mxu0 0.0
    %1806 = vmatpush1.msra.mxu0 0.0
    %1807 = vmatprep.subr.mxu0 0.0
    %1808 = vmatpush1.msra.mxu0 0.0
    %1809 = vmatprep.subr.mxu0 0.0
    %1810 = vmatpush1.msra.mxu0 0.0
    %1811 = vmatprep.subr.mxu0 0.0
    %1812 = vmatpush1.msra.mxu0 0.0
    %1813 = vmatprep.subr.mxu0 0.0
    %1814 = vmatpush1.msra.mxu0 0.0
    %1815 = vmatprep.subr.mxu0 0.0
    %1816 = vmatpush1.msra.mxu0 0.0
    %1817 = vmatprep.subr.mxu0 0.0
    %1818 = vmatpush1.msra.mxu0 0.0
    %1819 = vmatprep.subr.mxu0 0.0
    %1820 = vmatpush1.msra.mxu0 0.0
    %1821 = vmatprep.subr.mxu0 0.0
    %1822 = vmatpush1.msra.mxu0 0.0
    %1823 = vmatprep.subr.mxu0 0.0
    %1824 = vmatpush1.msra.mxu0 0.0
    %1825 = vmatprep.mubr.f32.mxu0 0.0
    %1826 = vmatmul.mubr.f32.gmra.mrb[0].mxu0 %v1759
    %v1827 = vpop.f32.mrb[0].mxu0
    %v1828 = vadd.f32 0.0, %v1827
    %v1829 = vpop.f32.mrb[0].mxu0
    %1830 = vdwg.mxu0
    %1832 = vset.pattern.permute.xlu0 3
    %1833 = vperm.xlu0 %1832, %v1828
    %v1834 = vpop.permute.xlu0 %1833
    %v1836 = vrcp.pop %v1834
    %v1837 = vmul.f32 %v1828, %v1836
    %vm1838 = vcmask 17408
    %1839 = vst.msk [vmem:[#allocation5] sm:$0x3] %vm1838, %v1837
    // Predicated region
    $region18: #{simple_lstm_forward.1} parent=1 // pred_check
      _
    $region19: #{simple_lstm_forward.1} parent=1 // pred_check_branch
      %1841 = sbr.rel (0) target = $region21
    $region20: #{simple_lstm_forward.1} parent=1 // pred_region
      %s1843 = ssub.s32 32, 32
      %1844 = vsyncadd [#allocation4], %s1843
      %s1846 = sshll.u32 [#allocation5], 4
      %s1847 = int_to_ptr.vmem [resolvable:$true] %s1846
      %1849 = dma.vmem_to_hbm [thread:$0]  %s1847, 32, %s3, [#allocation4]
    $region21: #{simple_lstm_forward.1} parent=1 // pred_fallthru
      _
    // Predicated region
    $region22: #{simple_lstm_forward.1} parent=1 // pred_check
      _
    $region23: #{simple_lstm_forward.1} parent=1 // pred_check_branch
      %1851 = sbr.rel (0) target = $region25
    $region24: #{simple_lstm_forward.1} parent=1 // pred_region
      %1852 = dma.done [#allocation4], 32
    $region25: #{simple_lstm_forward.1} parent=1 // pred_fallthru
      _
    %1853 = vsyncpa [#allocation3], 1
    %1854 = vsyncpa [#allocation4], 1

</llo_original>
